<compile_context>
chip_gen: v6e
topology: v6e:2x2x1
jax: 0.10.0
libtpu: 0.0.40
codegen_flags: <defaults>
</compile_context>

<pallas_src>
import jax
import jax.numpy as jnp
from jax.experimental import pallas as pl
from jax.experimental.pallas import tpu as pltpu

SUBLANE = 8  # f32 sublane group


def seq2seq_kernel(enc_x_ref, h0_ref, dec_x_ref,
                   wih_e_t_ref, whh_e_t_ref, b_e_ref,
                   wih_d_t_ref, whh_d_t_ref, b_d_ref,
                   wfc_t_ref, bfc_ref,
                   out_ref,
                   h_scratch):
    bp = h0_ref.shape[0]                 # padded batch (multiple of 8)
    seq_e = enc_x_ref.shape[0] // bp
    seq_d = dec_x_ref.shape[0] // bp

    # Recurrent weights loaded once; resident in vregs for the whole kernel.
    whh_e_t = whh_e_t_ref[...]           # (n_hidden, n_hidden)
    whh_d_t = whh_d_t_ref[...]

    # ---- Hoisted input projections (one MXU op per RNN, off the serial chain)
    #      proj[t*bp + b] = x[t, b] @ W_ih^T + (b_ih + b_hh)
    proj_e = jnp.dot(enc_x_ref[...], wih_e_t_ref[...],
                     preferred_element_type=jnp.float32) + b_e_ref[...]
    proj_d = jnp.dot(dec_x_ref[...], wih_d_t_ref[...],
                     preferred_element_type=jnp.float32) + b_d_ref[...]

    # ---- Encoder recurrence: h_t = tanh(proj_e[t] + h_{t-1} @ W_hh^T) ----
    # Fully unrolled (tiny trip count); every slice is sublane-aligned (bp=8k).
    h = h0_ref[...]                       # (bp, n_hidden)
    for t in range(seq_e):
        h = jnp.tanh(proj_e[t * bp:(t + 1) * bp, :]
                     + jnp.dot(h, whh_e_t, preferred_element_type=jnp.float32))

    # ---- Decoder recurrence; hidden states spilled to an aligned VMEM scratch
    for t in range(seq_d):
        h = jnp.tanh(proj_d[t * bp:(t + 1) * bp, :]
                     + jnp.dot(h, whh_d_t, preferred_element_type=jnp.float32))
        h_scratch[t * bp:(t + 1) * bp, :] = h   # aligned vst, off critical path

    # ---- Single fused fc over all decoder steps + one output store ----
    out_ref[...] = (jnp.dot(h_scratch[...], wfc_t_ref[...],
                            preferred_element_type=jnp.float32)
                    + bfc_ref[...]).astype(out_ref.dtype)


def seq2seq_forward(enc_input, enc_hidden, dec_input, params):
    """enc_input: (batch, seq_e, n_class), enc_hidden: (1, batch, n_hidden),
    dec_input: (batch, seq_d, n_class). Returns (seq_d, batch, n_class)."""
    enc_x = jnp.transpose(enc_input, (1, 0, 2)).astype(jnp.float32)
    dec_x = jnp.transpose(dec_input, (1, 0, 2)).astype(jnp.float32)
    seq_e, batch, n_class = enc_x.shape
    seq_d = dec_x.shape[0]
    n_hidden = params["whh_e"].shape[0]

    # Layout plumbing done in XLA, outside the hot kernel:
    #   * batch padded to a full sublane group (aligned per-step slices)
    #   * time-major inputs flattened to (seq*bp, n_class)
    #   * pre-transposed weights, pre-fused RNN biases (b_ih + b_hh)
    bp = ((batch + SUBLANE - 1) // SUBLANE) * SUBLANE
    pad_b = bp - batch
    enc_x_p = jnp.pad(enc_x, ((0, 0), (0, pad_b), (0, 0)))
    dec_x_p = jnp.pad(dec_x, ((0, 0), (0, pad_b), (0, 0)))
    h0_p = jnp.pad(enc_hidden.astype(jnp.float32)[0], ((0, pad_b), (0, 0)))

    args = (enc_x_p.reshape(seq_e * bp, n_class),
            h0_p,
            dec_x_p.reshape(seq_d * bp, n_class),
            params["wih_e"].T, params["whh_e"].T,
            (params["bih_e"] + params["bhh_e"])[None, :],
            params["wih_d"].T, params["whh_d"].T,
            (params["bih_d"] + params["bhh_d"])[None, :],
            params["wfc"].T, params["bfc"][None, :])

    vmem = pl.BlockSpec(memory_space=pltpu.MemorySpace.VMEM)
    out2d = pl.pallas_call(
        seq2seq_kernel,
        out_shape=jax.ShapeDtypeStruct((seq_d * bp, n_class), jnp.float32),
        in_specs=[vmem] * len(args),
        out_specs=vmem,
        scratch_shapes=[pltpu.VMEM((seq_d * bp, n_hidden), jnp.float32)],
    )(*args)
    # Rows are ordered (t, b); drop the batch padding and reshape back.
    return out2d.reshape(seq_d, bp, n_class)[:, :batch, :]


def _init_params(key, n_class, n_hidden):
    k_rnn = 1.0 / jnp.sqrt(jnp.float32(n_hidden))
    keys = jax.random.split(key, 10)

    def u(k, shape, bound):
        return jax.random.uniform(k, shape, jnp.float32, -bound, bound)

    return {
        "wih_e": u(keys[0], (n_hidden, n_class), k_rnn),
        "whh_e": u(keys[1], (n_hidden, n_hidden), k_rnn),
        "bih_e": u(keys[2], (n_hidden,), k_rnn),
        "bhh_e": u(keys[3], (n_hidden,), k_rnn),
        "wih_d": u(keys[4], (n_hidden, n_class), k_rnn),
        "whh_d": u(keys[5], (n_hidden, n_hidden), k_rnn),
        "bih_d": u(keys[6], (n_hidden,), k_rnn),
        "bhh_d": u(keys[7], (n_hidden,), k_rnn),
        "wfc":   u(keys[8], (n_class, n_hidden), k_rnn),
        "bfc":   u(keys[9], (n_class,), k_rnn),
    }


def _reference(enc_input, enc_hidden, dec_input, p):
    # Pure-JAX reference matching PyTorch RNN(tanh) semantics.
    enc_x = jnp.transpose(enc_input, (1, 0, 2))
    dec_x = jnp.transpose(dec_input, (1, 0, 2))
    h = enc_hidden[0]
    for t in range(enc_x.shape[0]):
        h = jnp.tanh(enc_x[t] @ p["wih_e"].T + p["bih_e"] + h @ p["whh_e"].T + p["bhh_e"])
    outs = []
    for t in range(dec_x.shape[0]):
        h = jnp.tanh(dec_x[t] @ p["wih_d"].T + p["bih_d"] + h @ p["whh_d"].T + p["bhh_d"])
        outs.append(h @ p["wfc"].T + p["bfc"])
    return jnp.stack(outs, axis=0)


if __name__ == "__main__":
    batch, seq_len, n_class, n_hidden = 2, 8, 16, 32

    key = jax.random.PRNGKey(0)
    k_params, k_enc, k_dec, k_h = jax.random.split(key, 4)
    params = _init_params(k_params, n_class, n_hidden)

    enc_input = jax.random.normal(k_enc, (batch, seq_len, n_class), jnp.float32)
    dec_input = jax.random.normal(k_dec, (batch, seq_len, n_class), jnp.float32)
    enc_hidden = jax.random.normal(k_h, (1, batch, n_hidden), jnp.float32)

    out = seq2seq_forward(enc_input, enc_hidden, dec_input, params)
    out = jax.block_until_ready(out)

    ref = _reference(enc_input, enc_hidden, dec_input, params)
    assert out.shape == (seq_len, batch, n_class)
    assert jnp.allclose(out, ref, atol=1e-4, rtol=1e-4)

    print("KERNEL_OK")
</pallas_src>

<mosaic_0001>
module attributes {stable_mosaic.version = 11 : i64} {
  func.func @seq2seq_kernel(%arg0: memref<64x16xf32, #tpu.memory_space<vmem>>, %arg1: memref<8x32xf32, #tpu.memory_space<vmem>>, %arg2: memref<64x16xf32, #tpu.memory_space<vmem>>, %arg3: memref<16x32xf32, #tpu.memory_space<vmem>>, %arg4: memref<32x32xf32, #tpu.memory_space<vmem>>, %arg5: memref<1x32xf32, #tpu.memory_space<vmem>>, %arg6: memref<16x32xf32, #tpu.memory_space<vmem>>, %arg7: memref<32x32xf32, #tpu.memory_space<vmem>>, %arg8: memref<1x32xf32, #tpu.memory_space<vmem>>, %arg9: memref<32x16xf32, #tpu.memory_space<vmem>>, %arg10: memref<1x16xf32, #tpu.memory_space<vmem>>, %arg11: memref<64x16xf32, #tpu.memory_space<vmem>>, %arg12: memref<64x32xf32, #tpu.memory_space<vmem>>) attributes {dimension_semantics = [], scalar_prefetch = 0 : i64, scratch_operands = 1 : i64, tpu.core_type = #tpu.core_type<tc>} {
    %c0 = arith.constant 0 : index
    %c0_0 = arith.constant 0 : index
    %0 = vector.load %arg4[%c0, %c0_0] : memref<32x32xf32, #tpu.memory_space<vmem>>, vector<32x32xf32>
    %c0_1 = arith.constant 0 : index
    %c0_2 = arith.constant 0 : index
    %1 = vector.load %arg7[%c0_1, %c0_2] : memref<32x32xf32, #tpu.memory_space<vmem>>, vector<32x32xf32>
    %c0_3 = arith.constant 0 : index
    %c0_4 = arith.constant 0 : index
    %2 = vector.load %arg0[%c0_3, %c0_4] : memref<64x16xf32, #tpu.memory_space<vmem>>, vector<64x16xf32>
    %c0_5 = arith.constant 0 : index
    %c0_6 = arith.constant 0 : index
    %3 = vector.load %arg3[%c0_5, %c0_6] : memref<16x32xf32, #tpu.memory_space<vmem>>, vector<16x32xf32>
    %cst = arith.constant dense<0.000000e+00> : vector<64x32xf32>
    %4 = tpu.matmul %2, %3, %cst {dimension_numbers = #tpu.dot_dimension_numbers<[1], [0], [0], [1], [0, 0, 1, 1], [], []>} : vector<64x16xf32>, vector<16x32xf32>, vector<64x32xf32> -> vector<64x32xf32>
    %c0_7 = arith.constant 0 : index
    %c0_8 = arith.constant 0 : index
    %5 = vector.load %arg5[%c0_7, %c0_8] : memref<1x32xf32, #tpu.memory_space<vmem>>, vector<1x32xf32>
    %6 = vector.broadcast %5 : vector<1x32xf32> to vector<64x32xf32>
    %7 = arith.addf %4, %6 : vector<64x32xf32>
    %c0_9 = arith.constant 0 : index
    %c0_10 = arith.constant 0 : index
    %8 = vector.load %arg2[%c0_9, %c0_10] : memref<64x16xf32, #tpu.memory_space<vmem>>, vector<64x16xf32>
    %c0_11 = arith.constant 0 : index
    %c0_12 = arith.constant 0 : index
    %9 = vector.load %arg6[%c0_11, %c0_12] : memref<16x32xf32, #tpu.memory_space<vmem>>, vector<16x32xf32>
    %cst_13 = arith.constant dense<0.000000e+00> : vector<64x32xf32>
    %10 = tpu.matmul %8, %9, %cst_13 {dimension_numbers = #tpu.dot_dimension_numbers<[1], [0], [0], [1], [0, 0, 1, 1], [], []>} : vector<64x16xf32>, vector<16x32xf32>, vector<64x32xf32> -> vector<64x32xf32>
    %c0_14 = arith.constant 0 : index
    %c0_15 = arith.constant 0 : index
    %11 = vector.load %arg8[%c0_14, %c0_15] : memref<1x32xf32, #tpu.memory_space<vmem>>, vector<1x32xf32>
    %12 = vector.broadcast %11 : vector<1x32xf32> to vector<64x32xf32>
    %13 = arith.addf %10, %12 : vector<64x32xf32>
    %c0_16 = arith.constant 0 : index
    %c0_17 = arith.constant 0 : index
    %14 = vector.load %arg1[%c0_16, %c0_17] : memref<8x32xf32, #tpu.memory_space<vmem>>, vector<8x32xf32>
    %15 = vector.extract_strided_slice %7 {offsets = [0, 0], sizes = [8, 32], strides = [1, 1]} : vector<64x32xf32> to vector<8x32xf32>
    %cst_18 = arith.constant dense<0.000000e+00> : vector<8x32xf32>
    %16 = tpu.matmul %14, %0, %cst_18 {dimension_numbers = #tpu.dot_dimension_numbers<[1], [0], [0], [1], [0, 0, 1, 1], [], []>} : vector<8x32xf32>, vector<32x32xf32>, vector<8x32xf32> -> vector<8x32xf32>
    %17 = arith.addf %15, %16 : vector<8x32xf32>
    %18 = math.tanh %17 : vector<8x32xf32>
    %19 = vector.extract_strided_slice %7 {offsets = [8, 0], sizes = [8, 32], strides = [1, 1]} : vector<64x32xf32> to vector<8x32xf32>
    %cst_19 = arith.constant dense<0.000000e+00> : vector<8x32xf32>
    %20 = tpu.matmul %18, %0, %cst_19 {dimension_numbers = #tpu.dot_dimension_numbers<[1], [0], [0], [1], [0, 0, 1, 1], [], []>} : vector<8x32xf32>, vector<32x32xf32>, vector<8x32xf32> -> vector<8x32xf32>
    %21 = arith.addf %19, %20 : vector<8x32xf32>
    %22 = math.tanh %21 : vector<8x32xf32>
    %23 = vector.extract_strided_slice %7 {offsets = [16, 0], sizes = [8, 32], strides = [1, 1]} : vector<64x32xf32> to vector<8x32xf32>
    %cst_20 = arith.constant dense<0.000000e+00> : vector<8x32xf32>
    %24 = tpu.matmul %22, %0, %cst_20 {dimension_numbers = #tpu.dot_dimension_numbers<[1], [0], [0], [1], [0, 0, 1, 1], [], []>} : vector<8x32xf32>, vector<32x32xf32>, vector<8x32xf32> -> vector<8x32xf32>
    %25 = arith.addf %23, %24 : vector<8x32xf32>
    %26 = math.tanh %25 : vector<8x32xf32>
    %27 = vector.extract_strided_slice %7 {offsets = [24, 0], sizes = [8, 32], strides = [1, 1]} : vector<64x32xf32> to vector<8x32xf32>
    %cst_21 = arith.constant dense<0.000000e+00> : vector<8x32xf32>
    %28 = tpu.matmul %26, %0, %cst_21 {dimension_numbers = #tpu.dot_dimension_numbers<[1], [0], [0], [1], [0, 0, 1, 1], [], []>} : vector<8x32xf32>, vector<32x32xf32>, vector<8x32xf32> -> vector<8x32xf32>
    %29 = arith.addf %27, %28 : vector<8x32xf32>
    %30 = math.tanh %29 : vector<8x32xf32>
    %31 = vector.extract_strided_slice %7 {offsets = [32, 0], sizes = [8, 32], strides = [1, 1]} : vector<64x32xf32> to vector<8x32xf32>
    %cst_22 = arith.constant dense<0.000000e+00> : vector<8x32xf32>
    %32 = tpu.matmul %30, %0, %cst_22 {dimension_numbers = #tpu.dot_dimension_numbers<[1], [0], [0], [1], [0, 0, 1, 1], [], []>} : vector<8x32xf32>, vector<32x32xf32>, vector<8x32xf32> -> vector<8x32xf32>
    %33 = arith.addf %31, %32 : vector<8x32xf32>
    %34 = math.tanh %33 : vector<8x32xf32>
    %35 = vector.extract_strided_slice %7 {offsets = [40, 0], sizes = [8, 32], strides = [1, 1]} : vector<64x32xf32> to vector<8x32xf32>
    %cst_23 = arith.constant dense<0.000000e+00> : vector<8x32xf32>
    %36 = tpu.matmul %34, %0, %cst_23 {dimension_numbers = #tpu.dot_dimension_numbers<[1], [0], [0], [1], [0, 0, 1, 1], [], []>} : vector<8x32xf32>, vector<32x32xf32>, vector<8x32xf32> -> vector<8x32xf32>
    %37 = arith.addf %35, %36 : vector<8x32xf32>
    %38 = math.tanh %37 : vector<8x32xf32>
    %39 = vector.extract_strided_slice %7 {offsets = [48, 0], sizes = [8, 32], strides = [1, 1]} : vector<64x32xf32> to vector<8x32xf32>
    %cst_24 = arith.constant dense<0.000000e+00> : vector<8x32xf32>
    %40 = tpu.matmul %38, %0, %cst_24 {dimension_numbers = #tpu.dot_dimension_numbers<[1], [0], [0], [1], [0, 0, 1, 1], [], []>} : vector<8x32xf32>, vector<32x32xf32>, vector<8x32xf32> -> vector<8x32xf32>
    %41 = arith.addf %39, %40 : vector<8x32xf32>
    %42 = math.tanh %41 : vector<8x32xf32>
    %43 = vector.extract_strided_slice %7 {offsets = [56, 0], sizes = [8, 32], strides = [1, 1]} : vector<64x32xf32> to vector<8x32xf32>
    %cst_25 = arith.constant dense<0.000000e+00> : vector<8x32xf32>
    %44 = tpu.matmul %42, %0, %cst_25 {dimension_numbers = #tpu.dot_dimension_numbers<[1], [0], [0], [1], [0, 0, 1, 1], [], []>} : vector<8x32xf32>, vector<32x32xf32>, vector<8x32xf32> -> vector<8x32xf32>
    %45 = arith.addf %43, %44 : vector<8x32xf32>
    %46 = math.tanh %45 : vector<8x32xf32>
    %47 = vector.extract_strided_slice %13 {offsets = [0, 0], sizes = [8, 32], strides = [1, 1]} : vector<64x32xf32> to vector<8x32xf32>
    %cst_26 = arith.constant dense<0.000000e+00> : vector<8x32xf32>
    %48 = tpu.matmul %46, %1, %cst_26 {dimension_numbers = #tpu.dot_dimension_numbers<[1], [0], [0], [1], [0, 0, 1, 1], [], []>} : vector<8x32xf32>, vector<32x32xf32>, vector<8x32xf32> -> vector<8x32xf32>
    %49 = arith.addf %47, %48 : vector<8x32xf32>
    %50 = math.tanh %49 : vector<8x32xf32>
    %c0_27 = arith.constant 0 : index
    %c0_28 = arith.constant 0 : index
    %51 = vector.load %arg12[%c0_27, %c0_28] : memref<64x32xf32, #tpu.memory_space<vmem>>, vector<8x32xf32>
    tpu.vector_store %arg12[%c0_27, %c0_28], %50 {strides = array<i32>} : memref<64x32xf32, #tpu.memory_space<vmem>>, vector<8x32xf32>,
    %52 = vector.extract_strided_slice %13 {offsets = [8, 0], sizes = [8, 32], strides = [1, 1]} : vector<64x32xf32> to vector<8x32xf32>
    %cst_29 = arith.constant dense<0.000000e+00> : vector<8x32xf32>
    %53 = tpu.matmul %50, %1, %cst_29 {dimension_numbers = #tpu.dot_dimension_numbers<[1], [0], [0], [1], [0, 0, 1, 1], [], []>} : vector<8x32xf32>, vector<32x32xf32>, vector<8x32xf32> -> vector<8x32xf32>
    %54 = arith.addf %52, %53 : vector<8x32xf32>
    %55 = math.tanh %54 : vector<8x32xf32>
    %c8 = arith.constant 8 : index
    %c0_30 = arith.constant 0 : index
    %56 = vector.load %arg12[%c8, %c0_30] : memref<64x32xf32, #tpu.memory_space<vmem>>, vector<8x32xf32>
    tpu.vector_store %arg12[%c8, %c0_30], %55 {strides = array<i32>} : memref<64x32xf32, #tpu.memory_space<vmem>>, vector<8x32xf32>,
    %57 = vector.extract_strided_slice %13 {offsets = [16, 0], sizes = [8, 32], strides = [1, 1]} : vector<64x32xf32> to vector<8x32xf32>
    %cst_31 = arith.constant dense<0.000000e+00> : vector<8x32xf32>
    %58 = tpu.matmul %55, %1, %cst_31 {dimension_numbers = #tpu.dot_dimension_numbers<[1], [0], [0], [1], [0, 0, 1, 1], [], []>} : vector<8x32xf32>, vector<32x32xf32>, vector<8x32xf32> -> vector<8x32xf32>
    %59 = arith.addf %57, %58 : vector<8x32xf32>
    %60 = math.tanh %59 : vector<8x32xf32>
    %c16 = arith.constant 16 : index
    %c0_32 = arith.constant 0 : index
    %61 = vector.load %arg12[%c16, %c0_32] : memref<64x32xf32, #tpu.memory_space<vmem>>, vector<8x32xf32>
    tpu.vector_store %arg12[%c16, %c0_32], %60 {strides = array<i32>} : memref<64x32xf32, #tpu.memory_space<vmem>>, vector<8x32xf32>,
    %62 = vector.extract_strided_slice %13 {offsets = [24, 0], sizes = [8, 32], strides = [1, 1]} : vector<64x32xf32> to vector<8x32xf32>
    %cst_33 = arith.constant dense<0.000000e+00> : vector<8x32xf32>
    %63 = tpu.matmul %60, %1, %cst_33 {dimension_numbers = #tpu.dot_dimension_numbers<[1], [0], [0], [1], [0, 0, 1, 1], [], []>} : vector<8x32xf32>, vector<32x32xf32>, vector<8x32xf32> -> vector<8x32xf32>
    %64 = arith.addf %62, %63 : vector<8x32xf32>
    %65 = math.tanh %64 : vector<8x32xf32>
    %c24 = arith.constant 24 : index
    %c0_34 = arith.constant 0 : index
    %66 = vector.load %arg12[%c24, %c0_34] : memref<64x32xf32, #tpu.memory_space<vmem>>, vector<8x32xf32>
    tpu.vector_store %arg12[%c24, %c0_34], %65 {strides = array<i32>} : memref<64x32xf32, #tpu.memory_space<vmem>>, vector<8x32xf32>,
    %67 = vector.extract_strided_slice %13 {offsets = [32, 0], sizes = [8, 32], strides = [1, 1]} : vector<64x32xf32> to vector<8x32xf32>
    %cst_35 = arith.constant dense<0.000000e+00> : vector<8x32xf32>
    %68 = tpu.matmul %65, %1, %cst_35 {dimension_numbers = #tpu.dot_dimension_numbers<[1], [0], [0], [1], [0, 0, 1, 1], [], []>} : vector<8x32xf32>, vector<32x32xf32>, vector<8x32xf32> -> vector<8x32xf32>
    %69 = arith.addf %67, %68 : vector<8x32xf32>
    %70 = math.tanh %69 : vector<8x32xf32>
    %c32 = arith.constant 32 : index
    %c0_36 = arith.constant 0 : index
    %71 = vector.load %arg12[%c32, %c0_36] : memref<64x32xf32, #tpu.memory_space<vmem>>, vector<8x32xf32>
    tpu.vector_store %arg12[%c32, %c0_36], %70 {strides = array<i32>} : memref<64x32xf32, #tpu.memory_space<vmem>>, vector<8x32xf32>,
    %72 = vector.extract_strided_slice %13 {offsets = [40, 0], sizes = [8, 32], strides = [1, 1]} : vector<64x32xf32> to vector<8x32xf32>
    %cst_37 = arith.constant dense<0.000000e+00> : vector<8x32xf32>
    %73 = tpu.matmul %70, %1, %cst_37 {dimension_numbers = #tpu.dot_dimension_numbers<[1], [0], [0], [1], [0, 0, 1, 1], [], []>} : vector<8x32xf32>, vector<32x32xf32>, vector<8x32xf32> -> vector<8x32xf32>
    %74 = arith.addf %72, %73 : vector<8x32xf32>
    %75 = math.tanh %74 : vector<8x32xf32>
    %c40 = arith.constant 40 : index
    %c0_38 = arith.constant 0 : index
    %76 = vector.load %arg12[%c40, %c0_38] : memref<64x32xf32, #tpu.memory_space<vmem>>, vector<8x32xf32>
    tpu.vector_store %arg12[%c40, %c0_38], %75 {strides = array<i32>} : memref<64x32xf32, #tpu.memory_space<vmem>>, vector<8x32xf32>,
    %77 = vector.extract_strided_slice %13 {offsets = [48, 0], sizes = [8, 32], strides = [1, 1]} : vector<64x32xf32> to vector<8x32xf32>
    %cst_39 = arith.constant dense<0.000000e+00> : vector<8x32xf32>
    %78 = tpu.matmul %75, %1, %cst_39 {dimension_numbers = #tpu.dot_dimension_numbers<[1], [0], [0], [1], [0, 0, 1, 1], [], []>} : vector<8x32xf32>, vector<32x32xf32>, vector<8x32xf32> -> vector<8x32xf32>
    %79 = arith.addf %77, %78 : vector<8x32xf32>
    %80 = math.tanh %79 : vector<8x32xf32>
    %c48 = arith.constant 48 : index
    %c0_40 = arith.constant 0 : index
    %81 = vector.load %arg12[%c48, %c0_40] : memref<64x32xf32, #tpu.memory_space<vmem>>, vector<8x32xf32>
    tpu.vector_store %arg12[%c48, %c0_40], %80 {strides = array<i32>} : memref<64x32xf32, #tpu.memory_space<vmem>>, vector<8x32xf32>,
    %82 = vector.extract_strided_slice %13 {offsets = [56, 0], sizes = [8, 32], strides = [1, 1]} : vector<64x32xf32> to vector<8x32xf32>
    %cst_41 = arith.constant dense<0.000000e+00> : vector<8x32xf32>
    %83 = tpu.matmul %80, %1, %cst_41 {dimension_numbers = #tpu.dot_dimension_numbers<[1], [0], [0], [1], [0, 0, 1, 1], [], []>} : vector<8x32xf32>, vector<32x32xf32>, vector<8x32xf32> -> vector<8x32xf32>
    %84 = arith.addf %82, %83 : vector<8x32xf32>
    %85 = math.tanh %84 : vector<8x32xf32>
    %c56 = arith.constant 56 : index
    %c0_42 = arith.constant 0 : index
    %86 = vector.load %arg12[%c56, %c0_42] : memref<64x32xf32, #tpu.memory_space<vmem>>, vector<8x32xf32>
    tpu.vector_store %arg12[%c56, %c0_42], %85 {strides = array<i32>} : memref<64x32xf32, #tpu.memory_space<vmem>>, vector<8x32xf32>,
    %c0_43 = arith.constant 0 : index
    %c0_44 = arith.constant 0 : index
    %87 = vector.load %arg12[%c0_43, %c0_44] : memref<64x32xf32, #tpu.memory_space<vmem>>, vector<64x32xf32>
    %c0_45 = arith.constant 0 : index
    %c0_46 = arith.constant 0 : index
    %88 = vector.load %arg9[%c0_45, %c0_46] : memref<32x16xf32, #tpu.memory_space<vmem>>, vector<32x16xf32>
    %cst_47 = arith.constant dense<0.000000e+00> : vector<64x16xf32>
    %89 = tpu.matmul %87, %88, %cst_47 {dimension_numbers = #tpu.dot_dimension_numbers<[1], [0], [0], [1], [0, 0, 1, 1], [], []>} : vector<64x32xf32>, vector<32x16xf32>, vector<64x16xf32> -> vector<64x16xf32>
    %c0_48 = arith.constant 0 : index
    %c0_49 = arith.constant 0 : index
    %90 = vector.load %arg10[%c0_48, %c0_49] : memref<1x16xf32, #tpu.memory_space<vmem>>, vector<1x16xf32>
    %91 = vector.broadcast %90 : vector<1x16xf32> to vector<64x16xf32>
    %92 = arith.addf %89, %91 : vector<64x16xf32>
    %c0_50 = arith.constant 0 : index
    %c0_51 = arith.constant 0 : index
    %93 = vector.load %arg11[%c0_50, %c0_51] : memref<64x16xf32, #tpu.memory_space<vmem>>, vector<64x16xf32>
    tpu.vector_store %arg11[%c0_50, %c0_51], %92 {strides = array<i32>} : memref<64x16xf32, #tpu.memory_space<vmem>>, vector<64x16xf32>,
    return
  }
}

</mosaic_0001>

<llo_original>
// kernel: tpu_custom_call.1
$region0: #{tpu_custom_call.1}
  #allocation0 [shape = 'u32[]', space=smem, size = 0x4, offset = 0x4, fixed_abs, tag = 'smem constant byte address 0x4 - core index']
  #allocation1 [shape = 'u32[144,128]{1,0:T(1,128)}', space=vmem, size = 0x12000, scoped, tag = 'internal scratch']
  #allocation2 [shape = 'f32[64,32]{1,0:T(8,128)}', space=vmem, size = 0x8000, scoped, tag = 'scratch operand']
  %s0 = inlined_call_operand.vmem [shape: f32[64,16], index: 0, kind: input, shape index: {}]
  %s1 = inlined_call_operand.vmem [shape: f32[8,32], index: 1, kind: input, shape index: {}]
  %s2 = inlined_call_operand.vmem [shape: f32[64,16], index: 2, kind: input, shape index: {}]
  %s3 = inlined_call_operand.vmem [shape: f32[16,32], index: 3, kind: input, shape index: {}]
  %s4 = inlined_call_operand.vmem [shape: f32[32,32], index: 4, kind: input, shape index: {}]
  %s5 = inlined_call_operand.vmem [shape: f32[1,32], index: 5, kind: input, shape index: {}]
  %s6 = inlined_call_operand.vmem [shape: f32[16,32], index: 6, kind: input, shape index: {}]
  %s7 = inlined_call_operand.vmem [shape: f32[32,32], index: 7, kind: input, shape index: {}]
  %s8 = inlined_call_operand.vmem [shape: f32[1,32], index: 8, kind: input, shape index: {}]
  %s9 = inlined_call_operand.vmem [shape: f32[32,16], index: 9, kind: input, shape index: {}]
  %s10 = inlined_call_operand.vmem [shape: f32[1,16], index: 10, kind: input, shape index: {}]
  %s11 = inlined_call_operand.vmem [shape: f32[64,16], index: 11, kind: output, shape index: {}]
  %s12 = sld [smem:[#allocation0]]
  $region54: #{tpu_custom_call.1} parent=0
    _
  %s14 = ssub.s32 1, %s12
  %s15 = scalar_select 0, %s14, %s12
  // Predicated region
  $region2: #{tpu_custom_call.1} parent=0 // pred_check
    _
  $region3: #{tpu_custom_call.1} parent=0 // pred_check_branch
    %17 = sbr.rel (0) target = $region5
  $region4: #{tpu_custom_call.1} parent=0 // pred_region
    _
  $region5: #{tpu_custom_call.1} parent=0 // pred_fallthru
    _
  // Predicated region
  $region6: #{tpu_custom_call.1} parent=0 // pred_check
    _
  $region7: #{tpu_custom_call.1} parent=0 // pred_check_branch
    %19 = sbr.rel (0) target = $region9
  $region8: #{tpu_custom_call.1} parent=0 // pred_region
    _
  $region9: #{tpu_custom_call.1} parent=0 // pred_fallthru
    _
  // Predicated region
  $region10: #{tpu_custom_call.1} parent=0 // pred_check
    _
  $region11: #{tpu_custom_call.1} parent=0 // pred_check_branch
    %21 = sbr.rel (0) target = $region13
  $region12: #{tpu_custom_call.1} parent=0 // pred_region
    _
  $region13: #{tpu_custom_call.1} parent=0 // pred_fallthru
    _
  // Predicated region
  $region14: #{tpu_custom_call.1} parent=0 // pred_check
    _
  $region15: #{tpu_custom_call.1} parent=0 // pred_check_branch
    %23 = sbr.rel (0) target = $region17
  $region16: #{tpu_custom_call.1} parent=0 // pred_region
    _
  $region17: #{tpu_custom_call.1} parent=0 // pred_fallthru
    _
  // Predicated region
  $region18: #{tpu_custom_call.1} parent=0 // pred_check
    _
  $region19: #{tpu_custom_call.1} parent=0 // pred_check_branch
    %25 = sbr.rel (0) target = $region21
  $region20: #{tpu_custom_call.1} parent=0 // pred_region
    _
  $region21: #{tpu_custom_call.1} parent=0 // pred_fallthru
    _
  // Predicated region
  $region22: #{tpu_custom_call.1} parent=0 // pred_check
    _
  $region23: #{tpu_custom_call.1} parent=0 // pred_check_branch
    %27 = sbr.rel (0) target = $region25
  $region24: #{tpu_custom_call.1} parent=0 // pred_region
    _
  $region25: #{tpu_custom_call.1} parent=0 // pred_fallthru
    _
  // Predicated region
  $region26: #{tpu_custom_call.1} parent=0 // pred_check
    _
  $region27: #{tpu_custom_call.1} parent=0 // pred_check_branch
    %29 = sbr.rel (0) target = $region29
  $region28: #{tpu_custom_call.1} parent=0 // pred_region
    _
  $region29: #{tpu_custom_call.1} parent=0 // pred_fallthru
    _
  // Predicated region
  $region30: #{tpu_custom_call.1} parent=0 // pred_check
    _
  $region31: #{tpu_custom_call.1} parent=0 // pred_check_branch
    %31 = sbr.rel (0) target = $region33
  $region32: #{tpu_custom_call.1} parent=0 // pred_region
    _
  $region33: #{tpu_custom_call.1} parent=0 // pred_fallthru
    _
  // Predicated region
  $region34: #{tpu_custom_call.1} parent=0 // pred_check
    _
  $region35: #{tpu_custom_call.1} parent=0 // pred_check_branch
    %33 = sbr.rel (0) target = $region37
  $region36: #{tpu_custom_call.1} parent=0 // pred_region
    _
  $region37: #{tpu_custom_call.1} parent=0 // pred_fallthru
    _
  // Predicated region
  $region38: #{tpu_custom_call.1} parent=0 // pred_check
    _
  $region39: #{tpu_custom_call.1} parent=0 // pred_check_branch
    %35 = sbr.rel (0) target = $region41
  $region40: #{tpu_custom_call.1} parent=0 // pred_region
    _
  $region41: #{tpu_custom_call.1} parent=0 // pred_fallthru
    _
  // Predicated region
  $region42: #{tpu_custom_call.1} parent=0 // pred_check
    _
  $region43: #{tpu_custom_call.1} parent=0 // pred_check_branch
    %37 = sbr.rel (0) target = $region45
  $region44: #{tpu_custom_call.1} parent=0 // pred_region
    _
  $region45: #{tpu_custom_call.1} parent=0 // pred_fallthru
    _
  %v38 = vld [vmem:[%s4] sm:$0xff]
  %v39 = vld [vmem:[%s4 + $0x8] sm:$0xff]
  %v40 = vld [vmem:[%s4 + $0x10] sm:$0xff]
  %v41 = vld [vmem:[%s4 + $0x18] sm:$0xff]
  %v42 = vld [vmem:[%s7] sm:$0xff]
  %v43 = vld [vmem:[%s7 + $0x8] sm:$0xff]
  %v44 = vld [vmem:[%s7 + $0x10] sm:$0xff]
  %v45 = vld [vmem:[%s7 + $0x18] sm:$0xff]
  %v46 = vld [vmem:[%s0] sm:$0xff]
  %v47 = vld [vmem:[%s0 + $0x8] sm:$0xff]
  %v48 = vld [vmem:[%s0 + $0x10] sm:$0xff]
  %v49 = vld [vmem:[%s0 + $0x18] sm:$0xff]
  %v50 = vld [vmem:[%s0 + $0x20] sm:$0xff]
  %v51 = vld [vmem:[%s0 + $0x28] sm:$0xff]
  %v52 = vld [vmem:[%s0 + $0x30] sm:$0xff]
  %v53 = vld [vmem:[%s0 + $0x38] sm:$0xff]
  %v54 = vld [vmem:[%s3] sm:$0xff]
  %v55 = vld [vmem:[%s3 + $0x8] sm:$0xff]
  %v56 = vld [vmem:[%s5] sm:$0x1]
  %v58 = vlaneseq
  %v59 = vshrl.u32 %v58, 7
  %v60 = vsub.s32 0, %v59
  %v61 = vrot.slane %v56, %v60
  %vm63 = vcmask 130048
  %v65 = vsel %vm63, %v46, 0
  %v68 = vsel %vm63, %v47, 0
  %v71 = vsel %vm63, %v48, 0
  %v74 = vsel %vm63, %v49, 0
  %v77 = vsel %vm63, %v50, 0
  %v80 = vsel %vm63, %v51, 0
  %v83 = vsel %vm63, %v52, 0
  %v86 = vsel %vm63, %v53, 0
  %88 = vmatprep.subr.mxu0 0.0
  %89 = vmatpush1.msra.mxu0 0.0
  %90 = vmatprep.subr.mxu0 0.0
  %91 = vmatpush1.msra.mxu0 0.0
  %92 = vmatprep.subr.mxu0 0.0
  %93 = vmatpush1.msra.mxu0 0.0
  %94 = vmatprep.subr.mxu0 0.0
  %95 = vmatpush1.msra.mxu0 0.0
  %96 = vmatprep.subr.mxu0 0.0
  %97 = vmatpush1.msra.mxu0 0.0
  %98 = vmatprep.subr.mxu0 0.0
  %99 = vmatpush1.msra.mxu0 0.0
  %100 = vmatprep.subr.mxu0 0.0
  %101 = vmatpush1.msra.mxu0 0.0
  %102 = vmatprep.subr.mxu0 0.0
  %103 = vmatpush1.msra.mxu0 0.0
  %104 = vmatprep.subr.mxu0 0.0
  %105 = vmatpush1.msra.mxu0 0.0
  %106 = vmatprep.subr.mxu0 0.0
  %107 = vmatpush1.msra.mxu0 0.0
  %108 = vmatprep.subr.mxu0 0.0
  %109 = vmatpush1.msra.mxu0 0.0
  %110 = vmatprep.subr.mxu0 0.0
  %111 = vmatpush1.msra.mxu0 0.0
  %112 = vmatprep.subr.mxu0 0.0
  %113 = vmatpush1.msra.mxu0 0.0
  %114 = vmatprep.subr.mxu0 0.0
  %115 = vmatpush1.msra.mxu0 0.0
  %116 = vmatprep.subr.mxu0 0.0
  %117 = vmatpush1.msra.mxu0 %v55
  %118 = vmatprep.subr.mxu0 0.0
  %119 = vmatpush1.msra.mxu0 %v54
  %120 = vmatprep.subr.mxu0 0.0
  %121 = vmatpush2.msra.mxu0 0.0
  %122 = vmatprep.subr.mxu0 0.0
  %123 = vmatpush2.msra.mxu0 0.0
  %124 = vmatprep.subr.mxu0 0.0
  %125 = vmatpush2.msra.mxu0 0.0
  %126 = vmatprep.subr.mxu0 0.0
  %127 = vmatpush2.msra.mxu0 0.0
  %128 = vmatprep.subr.mxu0 0.0
  %129 = vmatpush2.msra.mxu0 0.0
  %130 = vmatprep.subr.mxu0 0.0
  %131 = vmatpush2.msra.mxu0 0.0
  %132 = vmatprep.subr.mxu0 0.0
  %133 = vmatpush2.msra.mxu0 0.0
  %134 = vmatprep.subr.mxu0 0.0
  %135 = vmatpush2.msra.mxu0 0.0
  %136 = vmatprep.subr.mxu0 0.0
  %137 = vmatpush2.msra.mxu0 0.0
  %138 = vmatprep.subr.mxu0 0.0
  %139 = vmatpush2.msra.mxu0 0.0
  %140 = vmatprep.subr.mxu0 0.0
  %141 = vmatpush2.msra.mxu0 0.0
  %142 = vmatprep.subr.mxu0 0.0
  %143 = vmatpush2.msra.mxu0 0.0
  %144 = vmatprep.subr.mxu0 0.0
  %145 = vmatpush2.msra.mxu0 0.0
  %146 = vmatprep.subr.mxu0 0.0
  %147 = vmatpush2.msra.mxu0 0.0
  %148 = vmatprep.subr.mxu0 0.0
  %149 = vmatpush2.msra.mxu0 0.0
  %150 = vmatprep.subr.mxu0 0.0
  %151 = vmatpush2.msra.mxu0 0.0
  %152 = vmatprep.mubr.f32.mxu0 0.0
  %153 = vmatmul.mubr.f32.gmra.mxu0 %v65
  %v154 = vpop.f32.mrf.mxu0
  %v155 = vadd.f32 %v61, %v154
  %v156 = vpop.f32.mrf.mxu0
  %157 = vmatprep.mubr.f32.mxu0 0.0
  %158 = vmatmul.mubr.f32.gmra.mxu0 %v68
  %v159 = vpop.f32.mrf.mxu0
  %v160 = vadd.f32 %v61, %v159
  %v161 = vpop.f32.mrf.mxu0
  %162 = vmatprep.mubr.f32.mxu0 0.0
  %163 = vmatmul.mubr.f32.gmra.mxu0 %v71
  %v164 = vpop.f32.mrf.mxu0
  %v165 = vadd.f32 %v61, %v164
  %v166 = vpop.f32.mrf.mxu0
  %167 = vmatprep.mubr.f32.mxu0 0.0
  %168 = vmatmul.mubr.f32.gmra.mxu0 %v74
  %v169 = vpop.f32.mrf.mxu0
  %v170 = vadd.f32 %v61, %v169
  %v171 = vpop.f32.mrf.mxu0
  %172 = vmatprep.mubr.f32.mxu0 0.0
  %173 = vmatmul.mubr.f32.gmra.mxu0 %v77
  %v174 = vpop.f32.mrf.mxu0
  %v175 = vadd.f32 %v61, %v174
  %v176 = vpop.f32.mrf.mxu0
  %177 = vmatprep.mubr.f32.mxu0 0.0
  %178 = vmatmul.mubr.f32.gmra.mxu0 %v80
  %v179 = vpop.f32.mrf.mxu0
  %v180 = vadd.f32 %v61, %v179
  %v181 = vpop.f32.mrf.mxu0
  %182 = vmatprep.mubr.f32.mxu0 0.0
  %183 = vmatmul.mubr.f32.gmra.mxu0 %v83
  %v184 = vpop.f32.mrf.mxu0
  %v185 = vadd.f32 %v61, %v184
  %v186 = vpop.f32.mrf.mxu0
  %187 = vmatprep.mubr.f32.mxu0 0.0
  %188 = vmatmul.mubr.f32.gmra.mxu0 %v86
  %v189 = vpop.f32.mrf.mxu0
  %v190 = vadd.f32 %v61, %v189
  %v191 = vpop.f32.mrf.mxu0
  %192 = vdwg.mxu0
  %v193 = vld [vmem:[%s2] sm:$0xff]
  %v194 = vld [vmem:[%s2 + $0x8] sm:$0xff]
  %v195 = vld [vmem:[%s2 + $0x10] sm:$0xff]
  %v196 = vld [vmem:[%s2 + $0x18] sm:$0xff]
  %v197 = vld [vmem:[%s2 + $0x20] sm:$0xff]
  %v198 = vld [vmem:[%s2 + $0x28] sm:$0xff]
  %v199 = vld [vmem:[%s2 + $0x30] sm:$0xff]
  %v200 = vld [vmem:[%s2 + $0x38] sm:$0xff]
  %v201 = vld [vmem:[%s6] sm:$0xff]
  %v202 = vld [vmem:[%s6 + $0x8] sm:$0xff]
  %v203 = vld [vmem:[%s8] sm:$0x1]
  %v205 = vlaneseq
  %v206 = vshrl.u32 %v205, 7
  %v207 = vsub.s32 0, %v206
  %v208 = vrot.slane %v203, %v207
  %v211 = vsel %vm63, %v193, 0
  %v214 = vsel %vm63, %v194, 0
  %v217 = vsel %vm63, %v195, 0
  %v220 = vsel %vm63, %v196, 0
  %v223 = vsel %vm63, %v197, 0
  %v226 = vsel %vm63, %v198, 0
  %v229 = vsel %vm63, %v199, 0
  %v232 = vsel %vm63, %v200, 0
  %234 = vmatprep.subr.mxu0 0.0
  %235 = vmatpush1.msra.mxu0 0.0
  %236 = vmatprep.subr.mxu0 0.0
  %237 = vmatpush1.msra.mxu0 0.0
  %238 = vmatprep.subr.mxu0 0.0
  %239 = vmatpush1.msra.mxu0 0.0
  %240 = vmatprep.subr.mxu0 0.0
  %241 = vmatpush1.msra.mxu0 0.0
  %242 = vmatprep.subr.mxu0 0.0
  %243 = vmatpush1.msra.mxu0 0.0
  %244 = vmatprep.subr.mxu0 0.0
  %245 = vmatpush1.msra.mxu0 0.0
  %246 = vmatprep.subr.mxu0 0.0
  %247 = vmatpush1.msra.mxu0 0.0
  %248 = vmatprep.subr.mxu0 0.0
  %249 = vmatpush1.msra.mxu0 0.0
  %250 = vmatprep.subr.mxu0 0.0
  %251 = vmatpush1.msra.mxu0 0.0
  %252 = vmatprep.subr.mxu0 0.0
  %253 = vmatpush1.msra.mxu0 0.0
  %254 = vmatprep.subr.mxu0 0.0
  %255 = vmatpush1.msra.mxu0 0.0
  %256 = vmatprep.subr.mxu0 0.0
  %257 = vmatpush1.msra.mxu0 0.0
  %258 = vmatprep.subr.mxu0 0.0
  %259 = vmatpush1.msra.mxu0 0.0
  %260 = vmatprep.subr.mxu0 0.0
  %261 = vmatpush1.msra.mxu0 0.0
  %262 = vmatprep.subr.mxu0 0.0
  %263 = vmatpush1.msra.mxu0 %v202
  %264 = vmatprep.subr.mxu0 0.0
  %265 = vmatpush1.msra.mxu0 %v201
  %266 = vmatprep.subr.mxu0 0.0
  %267 = vmatpush2.msra.mxu0 0.0
  %268 = vmatprep.subr.mxu0 0.0
  %269 = vmatpush2.msra.mxu0 0.0
  %270 = vmatprep.subr.mxu0 0.0
  %271 = vmatpush2.msra.mxu0 0.0
  %272 = vmatprep.subr.mxu0 0.0
  %273 = vmatpush2.msra.mxu0 0.0
  %274 = vmatprep.subr.mxu0 0.0
  %275 = vmatpush2.msra.mxu0 0.0
  %276 = vmatprep.subr.mxu0 0.0
  %277 = vmatpush2.msra.mxu0 0.0
  %278 = vmatprep.subr.mxu0 0.0
  %279 = vmatpush2.msra.mxu0 0.0
  %280 = vmatprep.subr.mxu0 0.0
  %281 = vmatpush2.msra.mxu0 0.0
  %282 = vmatprep.subr.mxu0 0.0
  %283 = vmatpush2.msra.mxu0 0.0
  %284 = vmatprep.subr.mxu0 0.0
  %285 = vmatpush2.msra.mxu0 0.0
  %286 = vmatprep.subr.mxu0 0.0
  %287 = vmatpush2.msra.mxu0 0.0
  %288 = vmatprep.subr.mxu0 0.0
  %289 = vmatpush2.msra.mxu0 0.0
  %290 = vmatprep.subr.mxu0 0.0
  %291 = vmatpush2.msra.mxu0 0.0
  %292 = vmatprep.subr.mxu0 0.0
  %293 = vmatpush2.msra.mxu0 0.0
  %294 = vmatprep.subr.mxu0 0.0
  %295 = vmatpush2.msra.mxu0 0.0
  %296 = vmatprep.subr.mxu0 0.0
  %297 = vmatpush2.msra.mxu0 0.0
  %298 = vmatprep.mubr.f32.mxu0 0.0
  %299 = vmatmul.mubr.f32.gmra.mxu0 %v211
  %v300 = vpop.f32.mrf.mxu0
  %v301 = vadd.f32 %v208, %v300
  %v302 = vpop.f32.mrf.mxu0
  %303 = vmatprep.mubr.f32.mxu0 0.0
  %304 = vmatmul.mubr.f32.gmra.mxu0 %v214
  %v305 = vpop.f32.mrf.mxu0
  %v306 = vadd.f32 %v208, %v305
  %v307 = vpop.f32.mrf.mxu0
  %308 = vmatprep.mubr.f32.mxu0 0.0
  %309 = vmatmul.mubr.f32.gmra.mxu0 %v217
  %v310 = vpop.f32.mrf.mxu0
  %v311 = vadd.f32 %v208, %v310
  %v312 = vpop.f32.mrf.mxu0
  %313 = vmatprep.mubr.f32.mxu0 0.0
  %314 = vmatmul.mubr.f32.gmra.mxu0 %v220
  %v315 = vpop.f32.mrf.mxu0
  %v316 = vadd.f32 %v208, %v315
  %v317 = vpop.f32.mrf.mxu0
  %318 = vmatprep.mubr.f32.mxu0 0.0
  %319 = vmatmul.mubr.f32.gmra.mxu0 %v223
  %v320 = vpop.f32.mrf.mxu0
  %v321 = vadd.f32 %v208, %v320
  %v322 = vpop.f32.mrf.mxu0
  %323 = vmatprep.mubr.f32.mxu0 0.0
  %324 = vmatmul.mubr.f32.gmra.mxu0 %v226
  %v325 = vpop.f32.mrf.mxu0
  %v326 = vadd.f32 %v208, %v325
  %v327 = vpop.f32.mrf.mxu0
  %328 = vmatprep.mubr.f32.mxu0 0.0
  %329 = vmatmul.mubr.f32.gmra.mxu0 %v229
  %v330 = vpop.f32.mrf.mxu0
  %v331 = vadd.f32 %v208, %v330
  %v332 = vpop.f32.mrf.mxu0
  %333 = vmatprep.mubr.f32.mxu0 0.0
  %334 = vmatmul.mubr.f32.gmra.mxu0 %v232
  %v335 = vpop.f32.mrf.mxu0
  %v336 = vadd.f32 %v208, %v335
  %v337 = vpop.f32.mrf.mxu0
  %338 = vdwg.mxu0
  %v339 = vld [vmem:[%s1] sm:$0xff]
  %vm340 = vcmask 261120
  %v342 = vsel %vm340, %v339, 0
  %344 = vmatprep.subr.mxu0 0.0
  %345 = vmatpush1.msra.mxu0 0.0
  %346 = vmatprep.subr.mxu0 0.0
  %347 = vmatpush1.msra.mxu0 0.0
  %348 = vmatprep.subr.mxu0 0.0
  %349 = vmatpush1.msra.mxu0 0.0
  %350 = vmatprep.subr.mxu0 0.0
  %351 = vmatpush1.msra.mxu0 0.0
  %352 = vmatprep.subr.mxu0 0.0
  %353 = vmatpush1.msra.mxu0 0.0
  %354 = vmatprep.subr.mxu0 0.0
  %355 = vmatpush1.msra.mxu0 0.0
  %356 = vmatprep.subr.mxu0 0.0
  %357 = vmatpush1.msra.mxu0 0.0
  %358 = vmatprep.subr.mxu0 0.0
  %359 = vmatpush1.msra.mxu0 0.0
  %360 = vmatprep.subr.mxu0 0.0
  %361 = vmatpush1.msra.mxu0 0.0
  %362 = vmatprep.subr.mxu0 0.0
  %363 = vmatpush1.msra.mxu0 0.0
  %364 = vmatprep.subr.mxu0 0.0
  %365 = vmatpush1.msra.mxu0 0.0
  %366 = vmatprep.subr.mxu0 0.0
  %367 = vmatpush1.msra.mxu0 0.0
  %368 = vmatprep.subr.mxu0 0.0
  %369 = vmatpush1.msra.mxu0 %v41
  %370 = vmatprep.subr.mxu0 0.0
  %371 = vmatpush1.msra.mxu0 %v40
  %372 = vmatprep.subr.mxu0 0.0
  %373 = vmatpush1.msra.mxu0 %v39
  %374 = vmatprep.subr.mxu0 0.0
  %375 = vmatpush1.msra.mxu0 %v38
  %376 = vmatprep.subr.mxu0 0.0
  %377 = vmatpush2.msra.mxu0 0.0
  %378 = vmatprep.subr.mxu0 0.0
  %379 = vmatpush2.msra.mxu0 0.0
  %380 = vmatprep.subr.mxu0 0.0
  %381 = vmatpush2.msra.mxu0 0.0
  %382 = vmatprep.subr.mxu0 0.0
  %383 = vmatpush2.msra.mxu0 0.0
  %384 = vmatprep.subr.mxu0 0.0
  %385 = vmatpush2.msra.mxu0 0.0
  %386 = vmatprep.subr.mxu0 0.0
  %387 = vmatpush2.msra.mxu0 0.0
  %388 = vmatprep.subr.mxu0 0.0
  %389 = vmatpush2.msra.mxu0 0.0
  %390 = vmatprep.subr.mxu0 0.0
  %391 = vmatpush2.msra.mxu0 0.0
  %392 = vmatprep.subr.mxu0 0.0
  %393 = vmatpush2.msra.mxu0 0.0
  %394 = vmatprep.subr.mxu0 0.0
  %395 = vmatpush2.msra.mxu0 0.0
  %396 = vmatprep.subr.mxu0 0.0
  %397 = vmatpush2.msra.mxu0 0.0
  %398 = vmatprep.subr.mxu0 0.0
  %399 = vmatpush2.msra.mxu0 0.0
  %400 = vmatprep.subr.mxu0 0.0
  %401 = vmatpush2.msra.mxu0 0.0
  %402 = vmatprep.subr.mxu0 0.0
  %403 = vmatpush2.msra.mxu0 0.0
  %404 = vmatprep.subr.mxu0 0.0
  %405 = vmatpush2.msra.mxu0 0.0
  %406 = vmatprep.subr.mxu0 0.0
  %407 = vmatpush2.msra.mxu0 0.0
  %408 = vmatprep.mubr.f32.mxu0 0.0
  %409 = vmatmul.mubr.f32.gmra.mxu0 %v342
  %v410 = vpop.f32.mrf.mxu0
  %v411 = vadd.f32 0.0, %v410
  %v412 = vpop.f32.mrf.mxu0
  %413 = vdwg.mxu0
  %v414 = vadd.f32 %v155, %v411
  %v415 = vtanh.pop %v414
  %v417 = vsel %vm340, %v415, 0
  %419 = vmatprep.subr.mxu0 0.0
  %420 = vmatpush1.msra.mxu0 0.0
  %421 = vmatprep.subr.mxu0 0.0
  %422 = vmatpush1.msra.mxu0 0.0
  %423 = vmatprep.subr.mxu0 0.0
  %424 = vmatpush1.msra.mxu0 0.0
  %425 = vmatprep.subr.mxu0 0.0
  %426 = vmatpush1.msra.mxu0 0.0
  %427 = vmatprep.subr.mxu0 0.0
  %428 = vmatpush1.msra.mxu0 0.0
  %429 = vmatprep.subr.mxu0 0.0
  %430 = vmatpush1.msra.mxu0 0.0
  %431 = vmatprep.subr.mxu0 0.0
  %432 = vmatpush1.msra.mxu0 0.0
  %433 = vmatprep.subr.mxu0 0.0
  %434 = vmatpush1.msra.mxu0 0.0
  %435 = vmatprep.subr.mxu0 0.0
  %436 = vmatpush1.msra.mxu0 0.0
  %437 = vmatprep.subr.mxu0 0.0
  %438 = vmatpush1.msra.mxu0 0.0
  %439 = vmatprep.subr.mxu0 0.0
  %440 = vmatpush1.msra.mxu0 0.0
  %441 = vmatprep.subr.mxu0 0.0
  %442 = vmatpush1.msra.mxu0 0.0
  %443 = vmatprep.subr.mxu0 0.0
  %444 = vmatpush1.msra.mxu0 %v41
  %445 = vmatprep.subr.mxu0 0.0
  %446 = vmatpush1.msra.mxu0 %v40
  %447 = vmatprep.subr.mxu0 0.0
  %448 = vmatpush1.msra.mxu0 %v39
  %449 = vmatprep.subr.mxu0 0.0
  %450 = vmatpush1.msra.mxu0 %v38
  %451 = vmatprep.subr.mxu0 0.0
  %452 = vmatpush2.msra.mxu0 0.0
  %453 = vmatprep.subr.mxu0 0.0
  %454 = vmatpush2.msra.mxu0 0.0
  %455 = vmatprep.subr.mxu0 0.0
  %456 = vmatpush2.msra.mxu0 0.0
  %457 = vmatprep.subr.mxu0 0.0
  %458 = vmatpush2.msra.mxu0 0.0
  %459 = vmatprep.subr.mxu0 0.0
  %460 = vmatpush2.msra.mxu0 0.0
  %461 = vmatprep.subr.mxu0 0.0
  %462 = vmatpush2.msra.mxu0 0.0
  %463 = vmatprep.subr.mxu0 0.0
  %464 = vmatpush2.msra.mxu0 0.0
  %465 = vmatprep.subr.mxu0 0.0
  %466 = vmatpush2.msra.mxu0 0.0
  %467 = vmatprep.subr.mxu0 0.0
  %468 = vmatpush2.msra.mxu0 0.0
  %469 = vmatprep.subr.mxu0 0.0
  %470 = vmatpush2.msra.mxu0 0.0
  %471 = vmatprep.subr.mxu0 0.0
  %472 = vmatpush2.msra.mxu0 0.0
  %473 = vmatprep.subr.mxu0 0.0
  %474 = vmatpush2.msra.mxu0 0.0
  %475 = vmatprep.subr.mxu0 0.0
  %476 = vmatpush2.msra.mxu0 0.0
  %477 = vmatprep.subr.mxu0 0.0
  %478 = vmatpush2.msra.mxu0 0.0
  %479 = vmatprep.subr.mxu0 0.0
  %480 = vmatpush2.msra.mxu0 0.0
  %481 = vmatprep.subr.mxu0 0.0
  %482 = vmatpush2.msra.mxu0 0.0
  %483 = vmatprep.mubr.f32.mxu0 0.0
  %484 = vmatmul.mubr.f32.gmra.mxu0 %v417
  %v485 = vpop.f32.mrf.mxu0
  %v486 = vadd.f32 0.0, %v485
  %v487 = vpop.f32.mrf.mxu0
  %488 = vdwg.mxu0
  %v489 = vadd.f32 %v160, %v486
  %v490 = vtanh.pop %v489
  %v492 = vsel %vm340, %v490, 0
  %494 = vmatprep.subr.mxu0 0.0
  %495 = vmatpush1.msra.mxu0 0.0
  %496 = vmatprep.subr.mxu0 0.0
  %497 = vmatpush1.msra.mxu0 0.0
  %498 = vmatprep.subr.mxu0 0.0
  %499 = vmatpush1.msra.mxu0 0.0
  %500 = vmatprep.subr.mxu0 0.0
  %501 = vmatpush1.msra.mxu0 0.0
  %502 = vmatprep.subr.mxu0 0.0
  %503 = vmatpush1.msra.mxu0 0.0
  %504 = vmatprep.subr.mxu0 0.0
  %505 = vmatpush1.msra.mxu0 0.0
  %506 = vmatprep.subr.mxu0 0.0
  %507 = vmatpush1.msra.mxu0 0.0
  %508 = vmatprep.subr.mxu0 0.0
  %509 = vmatpush1.msra.mxu0 0.0
  %510 = vmatprep.subr.mxu0 0.0
  %511 = vmatpush1.msra.mxu0 0.0
  %512 = vmatprep.subr.mxu0 0.0
  %513 = vmatpush1.msra.mxu0 0.0
  %514 = vmatprep.subr.mxu0 0.0
  %515 = vmatpush1.msra.mxu0 0.0
  %516 = vmatprep.subr.mxu0 0.0
  %517 = vmatpush1.msra.mxu0 0.0
  %518 = vmatprep.subr.mxu0 0.0
  %519 = vmatpush1.msra.mxu0 %v41
  %520 = vmatprep.subr.mxu0 0.0
  %521 = vmatpush1.msra.mxu0 %v40
  %522 = vmatprep.subr.mxu0 0.0
  %523 = vmatpush1.msra.mxu0 %v39
  %524 = vmatprep.subr.mxu0 0.0
  %525 = vmatpush1.msra.mxu0 %v38
  %526 = vmatprep.subr.mxu0 0.0
  %527 = vmatpush2.msra.mxu0 0.0
  %528 = vmatprep.subr.mxu0 0.0
  %529 = vmatpush2.msra.mxu0 0.0
  %530 = vmatprep.subr.mxu0 0.0
  %531 = vmatpush2.msra.mxu0 0.0
  %532 = vmatprep.subr.mxu0 0.0
  %533 = vmatpush2.msra.mxu0 0.0
  %534 = vmatprep.subr.mxu0 0.0
  %535 = vmatpush2.msra.mxu0 0.0
  %536 = vmatprep.subr.mxu0 0.0
  %537 = vmatpush2.msra.mxu0 0.0
  %538 = vmatprep.subr.mxu0 0.0
  %539 = vmatpush2.msra.mxu0 0.0
  %540 = vmatprep.subr.mxu0 0.0
  %541 = vmatpush2.msra.mxu0 0.0
  %542 = vmatprep.subr.mxu0 0.0
  %543 = vmatpush2.msra.mxu0 0.0
  %544 = vmatprep.subr.mxu0 0.0
  %545 = vmatpush2.msra.mxu0 0.0
  %546 = vmatprep.subr.mxu0 0.0
  %547 = vmatpush2.msra.mxu0 0.0
  %548 = vmatprep.subr.mxu0 0.0
  %549 = vmatpush2.msra.mxu0 0.0
  %550 = vmatprep.subr.mxu0 0.0
  %551 = vmatpush2.msra.mxu0 0.0
  %552 = vmatprep.subr.mxu0 0.0
  %553 = vmatpush2.msra.mxu0 0.0
  %554 = vmatprep.subr.mxu0 0.0
  %555 = vmatpush2.msra.mxu0 0.0
  %556 = vmatprep.subr.mxu0 0.0
  %557 = vmatpush2.msra.mxu0 0.0
  %558 = vmatprep.mubr.f32.mxu0 0.0
  %559 = vmatmul.mubr.f32.gmra.mxu0 %v492
  %v560 = vpop.f32.mrf.mxu0
  %v561 = vadd.f32 0.0, %v560
  %v562 = vpop.f32.mrf.mxu0
  %563 = vdwg.mxu0
  %v564 = vadd.f32 %v165, %v561
  %v565 = vtanh.pop %v564
  %v567 = vsel %vm340, %v565, 0
  %569 = vmatprep.subr.mxu0 0.0
  %570 = vmatpush1.msra.mxu0 0.0
  %571 = vmatprep.subr.mxu0 0.0
  %572 = vmatpush1.msra.mxu0 0.0
  %573 = vmatprep.subr.mxu0 0.0
  %574 = vmatpush1.msra.mxu0 0.0
  %575 = vmatprep.subr.mxu0 0.0
  %576 = vmatpush1.msra.mxu0 0.0
  %577 = vmatprep.subr.mxu0 0.0
  %578 = vmatpush1.msra.mxu0 0.0
  %579 = vmatprep.subr.mxu0 0.0
  %580 = vmatpush1.msra.mxu0 0.0
  %581 = vmatprep.subr.mxu0 0.0
  %582 = vmatpush1.msra.mxu0 0.0
  %583 = vmatprep.subr.mxu0 0.0
  %584 = vmatpush1.msra.mxu0 0.0
  %585 = vmatprep.subr.mxu0 0.0
  %586 = vmatpush1.msra.mxu0 0.0
  %587 = vmatprep.subr.mxu0 0.0
  %588 = vmatpush1.msra.mxu0 0.0
  %589 = vmatprep.subr.mxu0 0.0
  %590 = vmatpush1.msra.mxu0 0.0
  %591 = vmatprep.subr.mxu0 0.0
  %592 = vmatpush1.msra.mxu0 0.0
  %593 = vmatprep.subr.mxu0 0.0
  %594 = vmatpush1.msra.mxu0 %v41
  %595 = vmatprep.subr.mxu0 0.0
  %596 = vmatpush1.msra.mxu0 %v40
  %597 = vmatprep.subr.mxu0 0.0
  %598 = vmatpush1.msra.mxu0 %v39
  %599 = vmatprep.subr.mxu0 0.0
  %600 = vmatpush1.msra.mxu0 %v38
  %601 = vmatprep.subr.mxu0 0.0
  %602 = vmatpush2.msra.mxu0 0.0
  %603 = vmatprep.subr.mxu0 0.0
  %604 = vmatpush2.msra.mxu0 0.0
  %605 = vmatprep.subr.mxu0 0.0
  %606 = vmatpush2.msra.mxu0 0.0
  %607 = vmatprep.subr.mxu0 0.0
  %608 = vmatpush2.msra.mxu0 0.0
  %609 = vmatprep.subr.mxu0 0.0
  %610 = vmatpush2.msra.mxu0 0.0
  %611 = vmatprep.subr.mxu0 0.0
  %612 = vmatpush2.msra.mxu0 0.0
  %613 = vmatprep.subr.mxu0 0.0
  %614 = vmatpush2.msra.mxu0 0.0
  %615 = vmatprep.subr.mxu0 0.0
  %616 = vmatpush2.msra.mxu0 0.0
  %617 = vmatprep.subr.mxu0 0.0
  %618 = vmatpush2.msra.mxu0 0.0
  %619 = vmatprep.subr.mxu0 0.0
  %620 = vmatpush2.msra.mxu0 0.0
  %621 = vmatprep.subr.mxu0 0.0
  %622 = vmatpush2.msra.mxu0 0.0
  %623 = vmatprep.subr.mxu0 0.0
  %624 = vmatpush2.msra.mxu0 0.0
  %625 = vmatprep.subr.mxu0 0.0
  %626 = vmatpush2.msra.mxu0 0.0
  %627 = vmatprep.subr.mxu0 0.0
  %628 = vmatpush2.msra.mxu0 0.0
  %629 = vmatprep.subr.mxu0 0.0
  %630 = vmatpush2.msra.mxu0 0.0
  %631 = vmatprep.subr.mxu0 0.0
  %632 = vmatpush2.msra.mxu0 0.0
  %633 = vmatprep.mubr.f32.mxu0 0.0
  %634 = vmatmul.mubr.f32.gmra.mxu0 %v567
  %v635 = vpop.f32.mrf.mxu0
  %v636 = vadd.f32 0.0, %v635
  %v637 = vpop.f32.mrf.mxu0
  %638 = vdwg.mxu0
  %v639 = vadd.f32 %v170, %v636
  %v640 = vtanh.pop %v639
  %v642 = vsel %vm340, %v640, 0
  %644 = vmatprep.subr.mxu0 0.0
  %645 = vmatpush1.msra.mxu0 0.0
  %646 = vmatprep.subr.mxu0 0.0
  %647 = vmatpush1.msra.mxu0 0.0
  %648 = vmatprep.subr.mxu0 0.0
  %649 = vmatpush1.msra.mxu0 0.0
  %650 = vmatprep.subr.mxu0 0.0
  %651 = vmatpush1.msra.mxu0 0.0
  %652 = vmatprep.subr.mxu0 0.0
  %653 = vmatpush1.msra.mxu0 0.0
  %654 = vmatprep.subr.mxu0 0.0
  %655 = vmatpush1.msra.mxu0 0.0
  %656 = vmatprep.subr.mxu0 0.0
  %657 = vmatpush1.msra.mxu0 0.0
  %658 = vmatprep.subr.mxu0 0.0
  %659 = vmatpush1.msra.mxu0 0.0
  %660 = vmatprep.subr.mxu0 0.0
  %661 = vmatpush1.msra.mxu0 0.0
  %662 = vmatprep.subr.mxu0 0.0
  %663 = vmatpush1.msra.mxu0 0.0
  %664 = vmatprep.subr.mxu0 0.0
  %665 = vmatpush1.msra.mxu0 0.0
  %666 = vmatprep.subr.mxu0 0.0
  %667 = vmatpush1.msra.mxu0 0.0
  %668 = vmatprep.subr.mxu0 0.0
  %669 = vmatpush1.msra.mxu0 %v41
  %670 = vmatprep.subr.mxu0 0.0
  %671 = vmatpush1.msra.mxu0 %v40
  %672 = vmatprep.subr.mxu0 0.0
  %673 = vmatpush1.msra.mxu0 %v39
  %674 = vmatprep.subr.mxu0 0.0
  %675 = vmatpush1.msra.mxu0 %v38
  %676 = vmatprep.subr.mxu0 0.0
  %677 = vmatpush2.msra.mxu0 0.0
  %678 = vmatprep.subr.mxu0 0.0
  %679 = vmatpush2.msra.mxu0 0.0
  %680 = vmatprep.subr.mxu0 0.0
  %681 = vmatpush2.msra.mxu0 0.0
  %682 = vmatprep.subr.mxu0 0.0
  %683 = vmatpush2.msra.mxu0 0.0
  %684 = vmatprep.subr.mxu0 0.0
  %685 = vmatpush2.msra.mxu0 0.0
  %686 = vmatprep.subr.mxu0 0.0
  %687 = vmatpush2.msra.mxu0 0.0
  %688 = vmatprep.subr.mxu0 0.0
  %689 = vmatpush2.msra.mxu0 0.0
  %690 = vmatprep.subr.mxu0 0.0
  %691 = vmatpush2.msra.mxu0 0.0
  %692 = vmatprep.subr.mxu0 0.0
  %693 = vmatpush2.msra.mxu0 0.0
  %694 = vmatprep.subr.mxu0 0.0
  %695 = vmatpush2.msra.mxu0 0.0
  %696 = vmatprep.subr.mxu0 0.0
  %697 = vmatpush2.msra.mxu0 0.0
  %698 = vmatprep.subr.mxu0 0.0
  %699 = vmatpush2.msra.mxu0 0.0
  %700 = vmatprep.subr.mxu0 0.0
  %701 = vmatpush2.msra.mxu0 0.0
  %702 = vmatprep.subr.mxu0 0.0
  %703 = vmatpush2.msra.mxu0 0.0
  %704 = vmatprep.subr.mxu0 0.0
  %705 = vmatpush2.msra.mxu0 0.0
  %706 = vmatprep.subr.mxu0 0.0
  %707 = vmatpush2.msra.mxu0 0.0
  %708 = vmatprep.mubr.f32.mxu0 0.0
  %709 = vmatmul.mubr.f32.gmra.mxu0 %v642
  %v710 = vpop.f32.mrf.mxu0
  %v711 = vadd.f32 0.0, %v710
  %v712 = vpop.f32.mrf.mxu0
  %713 = vdwg.mxu0
  %v714 = vadd.f32 %v175, %v711
  %v715 = vtanh.pop %v714
  %v717 = vsel %vm340, %v715, 0
  %719 = vmatprep.subr.mxu0 0.0
  %720 = vmatpush1.msra.mxu0 0.0
  %721 = vmatprep.subr.mxu0 0.0
  %722 = vmatpush1.msra.mxu0 0.0
  %723 = vmatprep.subr.mxu0 0.0
  %724 = vmatpush1.msra.mxu0 0.0
  %725 = vmatprep.subr.mxu0 0.0
  %726 = vmatpush1.msra.mxu0 0.0
  %727 = vmatprep.subr.mxu0 0.0
  %728 = vmatpush1.msra.mxu0 0.0
  %729 = vmatprep.subr.mxu0 0.0
  %730 = vmatpush1.msra.mxu0 0.0
  %731 = vmatprep.subr.mxu0 0.0
  %732 = vmatpush1.msra.mxu0 0.0
  %733 = vmatprep.subr.mxu0 0.0
  %734 = vmatpush1.msra.mxu0 0.0
  %735 = vmatprep.subr.mxu0 0.0
  %736 = vmatpush1.msra.mxu0 0.0
  %737 = vmatprep.subr.mxu0 0.0
  %738 = vmatpush1.msra.mxu0 0.0
  %739 = vmatprep.subr.mxu0 0.0
  %740 = vmatpush1.msra.mxu0 0.0
  %741 = vmatprep.subr.mxu0 0.0
  %742 = vmatpush1.msra.mxu0 0.0
  %743 = vmatprep.subr.mxu0 0.0
  %744 = vmatpush1.msra.mxu0 %v41
  %745 = vmatprep.subr.mxu0 0.0
  %746 = vmatpush1.msra.mxu0 %v40
  %747 = vmatprep.subr.mxu0 0.0
  %748 = vmatpush1.msra.mxu0 %v39
  %749 = vmatprep.subr.mxu0 0.0
  %750 = vmatpush1.msra.mxu0 %v38
  %751 = vmatprep.subr.mxu0 0.0
  %752 = vmatpush2.msra.mxu0 0.0
  %753 = vmatprep.subr.mxu0 0.0
  %754 = vmatpush2.msra.mxu0 0.0
  %755 = vmatprep.subr.mxu0 0.0
  %756 = vmatpush2.msra.mxu0 0.0
  %757 = vmatprep.subr.mxu0 0.0
  %758 = vmatpush2.msra.mxu0 0.0
  %759 = vmatprep.subr.mxu0 0.0
  %760 = vmatpush2.msra.mxu0 0.0
  %761 = vmatprep.subr.mxu0 0.0
  %762 = vmatpush2.msra.mxu0 0.0
  %763 = vmatprep.subr.mxu0 0.0
  %764 = vmatpush2.msra.mxu0 0.0
  %765 = vmatprep.subr.mxu0 0.0
  %766 = vmatpush2.msra.mxu0 0.0
  %767 = vmatprep.subr.mxu0 0.0
  %768 = vmatpush2.msra.mxu0 0.0
  %769 = vmatprep.subr.mxu0 0.0
  %770 = vmatpush2.msra.mxu0 0.0
  %771 = vmatprep.subr.mxu0 0.0
  %772 = vmatpush2.msra.mxu0 0.0
  %773 = vmatprep.subr.mxu0 0.0
  %774 = vmatpush2.msra.mxu0 0.0
  %775 = vmatprep.subr.mxu0 0.0
  %776 = vmatpush2.msra.mxu0 0.0
  %777 = vmatprep.subr.mxu0 0.0
  %778 = vmatpush2.msra.mxu0 0.0
  %779 = vmatprep.subr.mxu0 0.0
  %780 = vmatpush2.msra.mxu0 0.0
  %781 = vmatprep.subr.mxu0 0.0
  %782 = vmatpush2.msra.mxu0 0.0
  %783 = vmatprep.mubr.f32.mxu0 0.0
  %784 = vmatmul.mubr.f32.gmra.mxu0 %v717
  %v785 = vpop.f32.mrf.mxu0
  %v786 = vadd.f32 0.0, %v785
  %v787 = vpop.f32.mrf.mxu0
  %788 = vdwg.mxu0
  %v789 = vadd.f32 %v180, %v786
  %v790 = vtanh.pop %v789
  %v792 = vsel %vm340, %v790, 0
  %794 = vmatprep.subr.mxu0 0.0
  %795 = vmatpush1.msra.mxu0 0.0
  %796 = vmatprep.subr.mxu0 0.0
  %797 = vmatpush1.msra.mxu0 0.0
  %798 = vmatprep.subr.mxu0 0.0
  %799 = vmatpush1.msra.mxu0 0.0
  %800 = vmatprep.subr.mxu0 0.0
  %801 = vmatpush1.msra.mxu0 0.0
  %802 = vmatprep.subr.mxu0 0.0
  %803 = vmatpush1.msra.mxu0 0.0
  %804 = vmatprep.subr.mxu0 0.0
  %805 = vmatpush1.msra.mxu0 0.0
  %806 = vmatprep.subr.mxu0 0.0
  %807 = vmatpush1.msra.mxu0 0.0
  %808 = vmatprep.subr.mxu0 0.0
  %809 = vmatpush1.msra.mxu0 0.0
  %810 = vmatprep.subr.mxu0 0.0
  %811 = vmatpush1.msra.mxu0 0.0
  %812 = vmatprep.subr.mxu0 0.0
  %813 = vmatpush1.msra.mxu0 0.0
  %814 = vmatprep.subr.mxu0 0.0
  %815 = vmatpush1.msra.mxu0 0.0
  %816 = vmatprep.subr.mxu0 0.0
  %817 = vmatpush1.msra.mxu0 0.0
  %818 = vmatprep.subr.mxu0 0.0
  %819 = vmatpush1.msra.mxu0 %v41
  %820 = vmatprep.subr.mxu0 0.0
  %821 = vmatpush1.msra.mxu0 %v40
  %822 = vmatprep.subr.mxu0 0.0
  %823 = vmatpush1.msra.mxu0 %v39
  %824 = vmatprep.subr.mxu0 0.0
  %825 = vmatpush1.msra.mxu0 %v38
  %826 = vmatprep.subr.mxu0 0.0
  %827 = vmatpush2.msra.mxu0 0.0
  %828 = vmatprep.subr.mxu0 0.0
  %829 = vmatpush2.msra.mxu0 0.0
  %830 = vmatprep.subr.mxu0 0.0
  %831 = vmatpush2.msra.mxu0 0.0
  %832 = vmatprep.subr.mxu0 0.0
  %833 = vmatpush2.msra.mxu0 0.0
  %834 = vmatprep.subr.mxu0 0.0
  %835 = vmatpush2.msra.mxu0 0.0
  %836 = vmatprep.subr.mxu0 0.0
  %837 = vmatpush2.msra.mxu0 0.0
  %838 = vmatprep.subr.mxu0 0.0
  %839 = vmatpush2.msra.mxu0 0.0
  %840 = vmatprep.subr.mxu0 0.0
  %841 = vmatpush2.msra.mxu0 0.0
  %842 = vmatprep.subr.mxu0 0.0
  %843 = vmatpush2.msra.mxu0 0.0
  %844 = vmatprep.subr.mxu0 0.0
  %845 = vmatpush2.msra.mxu0 0.0
  %846 = vmatprep.subr.mxu0 0.0
  %847 = vmatpush2.msra.mxu0 0.0
  %848 = vmatprep.subr.mxu0 0.0
  %849 = vmatpush2.msra.mxu0 0.0
  %850 = vmatprep.subr.mxu0 0.0
  %851 = vmatpush2.msra.mxu0 0.0
  %852 = vmatprep.subr.mxu0 0.0
  %853 = vmatpush2.msra.mxu0 0.0
  %854 = vmatprep.subr.mxu0 0.0
  %855 = vmatpush2.msra.mxu0 0.0
  %856 = vmatprep.subr.mxu0 0.0
  %857 = vmatpush2.msra.mxu0 0.0
  %858 = vmatprep.mubr.f32.mxu0 0.0
  %859 = vmatmul.mubr.f32.gmra.mxu0 %v792
  %v860 = vpop.f32.mrf.mxu0
  %v861 = vadd.f32 0.0, %v860
  %v862 = vpop.f32.mrf.mxu0
  %863 = vdwg.mxu0
  %v864 = vadd.f32 %v185, %v861
  %v865 = vtanh.pop %v864
  %v867 = vsel %vm340, %v865, 0
  %869 = vmatprep.subr.mxu0 0.0
  %870 = vmatpush1.msra.mxu0 0.0
  %871 = vmatprep.subr.mxu0 0.0
  %872 = vmatpush1.msra.mxu0 0.0
  %873 = vmatprep.subr.mxu0 0.0
  %874 = vmatpush1.msra.mxu0 0.0
  %875 = vmatprep.subr.mxu0 0.0
  %876 = vmatpush1.msra.mxu0 0.0
  %877 = vmatprep.subr.mxu0 0.0
  %878 = vmatpush1.msra.mxu0 0.0
  %879 = vmatprep.subr.mxu0 0.0
  %880 = vmatpush1.msra.mxu0 0.0
  %881 = vmatprep.subr.mxu0 0.0
  %882 = vmatpush1.msra.mxu0 0.0
  %883 = vmatprep.subr.mxu0 0.0
  %884 = vmatpush1.msra.mxu0 0.0
  %885 = vmatprep.subr.mxu0 0.0
  %886 = vmatpush1.msra.mxu0 0.0
  %887 = vmatprep.subr.mxu0 0.0
  %888 = vmatpush1.msra.mxu0 0.0
  %889 = vmatprep.subr.mxu0 0.0
  %890 = vmatpush1.msra.mxu0 0.0
  %891 = vmatprep.subr.mxu0 0.0
  %892 = vmatpush1.msra.mxu0 0.0
  %893 = vmatprep.subr.mxu0 0.0
  %894 = vmatpush1.msra.mxu0 %v41
  %895 = vmatprep.subr.mxu0 0.0
  %896 = vmatpush1.msra.mxu0 %v40
  %897 = vmatprep.subr.mxu0 0.0
  %898 = vmatpush1.msra.mxu0 %v39
  %899 = vmatprep.subr.mxu0 0.0
  %900 = vmatpush1.msra.mxu0 %v38
  %901 = vmatprep.subr.mxu0 0.0
  %902 = vmatpush2.msra.mxu0 0.0
  %903 = vmatprep.subr.mxu0 0.0
  %904 = vmatpush2.msra.mxu0 0.0
  %905 = vmatprep.subr.mxu0 0.0
  %906 = vmatpush2.msra.mxu0 0.0
  %907 = vmatprep.subr.mxu0 0.0
  %908 = vmatpush2.msra.mxu0 0.0
  %909 = vmatprep.subr.mxu0 0.0
  %910 = vmatpush2.msra.mxu0 0.0
  %911 = vmatprep.subr.mxu0 0.0
  %912 = vmatpush2.msra.mxu0 0.0
  %913 = vmatprep.subr.mxu0 0.0
  %914 = vmatpush2.msra.mxu0 0.0
  %915 = vmatprep.subr.mxu0 0.0
  %916 = vmatpush2.msra.mxu0 0.0
  %917 = vmatprep.subr.mxu0 0.0
  %918 = vmatpush2.msra.mxu0 0.0
  %919 = vmatprep.subr.mxu0 0.0
  %920 = vmatpush2.msra.mxu0 0.0
  %921 = vmatprep.subr.mxu0 0.0
  %922 = vmatpush2.msra.mxu0 0.0
  %923 = vmatprep.subr.mxu0 0.0
  %924 = vmatpush2.msra.mxu0 0.0
  %925 = vmatprep.subr.mxu0 0.0
  %926 = vmatpush2.msra.mxu0 0.0
  %927 = vmatprep.subr.mxu0 0.0
  %928 = vmatpush2.msra.mxu0 0.0
  %929 = vmatprep.subr.mxu0 0.0
  %930 = vmatpush2.msra.mxu0 0.0
  %931 = vmatprep.subr.mxu0 0.0
  %932 = vmatpush2.msra.mxu0 0.0
  %933 = vmatprep.mubr.f32.mxu0 0.0
  %934 = vmatmul.mubr.f32.gmra.mxu0 %v867
  %v935 = vpop.f32.mrf.mxu0
  %v936 = vadd.f32 0.0, %v935
  %v937 = vpop.f32.mrf.mxu0
  %938 = vdwg.mxu0
  %v939 = vadd.f32 %v190, %v936
  %v940 = vtanh.pop %v939
  %v942 = vsel %vm340, %v940, 0
  %944 = vmatprep.subr.mxu0 0.0
  %945 = vmatpush1.msra.mxu0 0.0
  %946 = vmatprep.subr.mxu0 0.0
  %947 = vmatpush1.msra.mxu0 0.0
  %948 = vmatprep.subr.mxu0 0.0
  %949 = vmatpush1.msra.mxu0 0.0
  %950 = vmatprep.subr.mxu0 0.0
  %951 = vmatpush1.msra.mxu0 0.0
  %952 = vmatprep.subr.mxu0 0.0
  %953 = vmatpush1.msra.mxu0 0.0
  %954 = vmatprep.subr.mxu0 0.0
  %955 = vmatpush1.msra.mxu0 0.0
  %956 = vmatprep.subr.mxu0 0.0
  %957 = vmatpush1.msra.mxu0 0.0
  %958 = vmatprep.subr.mxu0 0.0
  %959 = vmatpush1.msra.mxu0 0.0
  %960 = vmatprep.subr.mxu0 0.0
  %961 = vmatpush1.msra.mxu0 0.0
  %962 = vmatprep.subr.mxu0 0.0
  %963 = vmatpush1.msra.mxu0 0.0
  %964 = vmatprep.subr.mxu0 0.0
  %965 = vmatpush1.msra.mxu0 0.0
  %966 = vmatprep.subr.mxu0 0.0
  %967 = vmatpush1.msra.mxu0 0.0
  %968 = vmatprep.subr.mxu0 0.0
  %969 = vmatpush1.msra.mxu0 %v45
  %970 = vmatprep.subr.mxu0 0.0
  %971 = vmatpush1.msra.mxu0 %v44
  %972 = vmatprep.subr.mxu0 0.0
  %973 = vmatpush1.msra.mxu0 %v43
  %974 = vmatprep.subr.mxu0 0.0
  %975 = vmatpush1.msra.mxu0 %v42
  %976 = vmatprep.subr.mxu0 0.0
  %977 = vmatpush2.msra.mxu0 0.0
  %978 = vmatprep.subr.mxu0 0.0
  %979 = vmatpush2.msra.mxu0 0.0
  %980 = vmatprep.subr.mxu0 0.0
  %981 = vmatpush2.msra.mxu0 0.0
  %982 = vmatprep.subr.mxu0 0.0
  %983 = vmatpush2.msra.mxu0 0.0
  %984 = vmatprep.subr.mxu0 0.0
  %985 = vmatpush2.msra.mxu0 0.0
  %986 = vmatprep.subr.mxu0 0.0
  %987 = vmatpush2.msra.mxu0 0.0
  %988 = vmatprep.subr.mxu0 0.0
  %989 = vmatpush2.msra.mxu0 0.0
  %990 = vmatprep.subr.mxu0 0.0
  %991 = vmatpush2.msra.mxu0 0.0
  %992 = vmatprep.subr.mxu0 0.0
  %993 = vmatpush2.msra.mxu0 0.0
  %994 = vmatprep.subr.mxu0 0.0
  %995 = vmatpush2.msra.mxu0 0.0
  %996 = vmatprep.subr.mxu0 0.0
  %997 = vmatpush2.msra.mxu0 0.0
  %998 = vmatprep.subr.mxu0 0.0
  %999 = vmatpush2.msra.mxu0 0.0
  %1000 = vmatprep.subr.mxu0 0.0
  %1001 = vmatpush2.msra.mxu0 0.0
  %1002 = vmatprep.subr.mxu0 0.0
  %1003 = vmatpush2.msra.mxu0 0.0
  %1004 = vmatprep.subr.mxu0 0.0
  %1005 = vmatpush2.msra.mxu0 0.0
  %1006 = vmatprep.subr.mxu0 0.0
  %1007 = vmatpush2.msra.mxu0 0.0
  %1008 = vmatprep.mubr.f32.mxu0 0.0
  %1009 = vmatmul.mubr.f32.gmra.mxu0 %v942
  %v1010 = vpop.f32.mrf.mxu0
  %v1011 = vadd.f32 0.0, %v1010
  %v1012 = vpop.f32.mrf.mxu0
  %1013 = vdwg.mxu0
  %v1014 = vadd.f32 %v301, %v1011
  %v1015 = vtanh.pop %v1014
  %1016 = vst.msk [vmem:[#allocation2] sm:$0xff] %vm340, %v1015
  %v1018 = vsel %vm340, %v1015, 0
  %1020 = vmatprep.subr.mxu0 0.0
  %1021 = vmatpush1.msra.mxu0 0.0
  %1022 = vmatprep.subr.mxu0 0.0
  %1023 = vmatpush1.msra.mxu0 0.0
  %1024 = vmatprep.subr.mxu0 0.0
  %1025 = vmatpush1.msra.mxu0 0.0
  %1026 = vmatprep.subr.mxu0 0.0
  %1027 = vmatpush1.msra.mxu0 0.0
  %1028 = vmatprep.subr.mxu0 0.0
  %1029 = vmatpush1.msra.mxu0 0.0
  %1030 = vmatprep.subr.mxu0 0.0
  %1031 = vmatpush1.msra.mxu0 0.0
  %1032 = vmatprep.subr.mxu0 0.0
  %1033 = vmatpush1.msra.mxu0 0.0
  %1034 = vmatprep.subr.mxu0 0.0
  %1035 = vmatpush1.msra.mxu0 0.0
  %1036 = vmatprep.subr.mxu0 0.0
  %1037 = vmatpush1.msra.mxu0 0.0
  %1038 = vmatprep.subr.mxu0 0.0
  %1039 = vmatpush1.msra.mxu0 0.0
  %1040 = vmatprep.subr.mxu0 0.0
  %1041 = vmatpush1.msra.mxu0 0.0
  %1042 = vmatprep.subr.mxu0 0.0
  %1043 = vmatpush1.msra.mxu0 0.0
  %1044 = vmatprep.subr.mxu0 0.0
  %1045 = vmatpush1.msra.mxu0 %v45
  %1046 = vmatprep.subr.mxu0 0.0
  %1047 = vmatpush1.msra.mxu0 %v44
  %1048 = vmatprep.subr.mxu0 0.0
  %1049 = vmatpush1.msra.mxu0 %v43
  %1050 = vmatprep.subr.mxu0 0.0
  %1051 = vmatpush1.msra.mxu0 %v42
  %1052 = vmatprep.subr.mxu0 0.0
  %1053 = vmatpush2.msra.mxu0 0.0
  %1054 = vmatprep.subr.mxu0 0.0
  %1055 = vmatpush2.msra.mxu0 0.0
  %1056 = vmatprep.subr.mxu0 0.0
  %1057 = vmatpush2.msra.mxu0 0.0
  %1058 = vmatprep.subr.mxu0 0.0
  %1059 = vmatpush2.msra.mxu0 0.0
  %1060 = vmatprep.subr.mxu0 0.0
  %1061 = vmatpush2.msra.mxu0 0.0
  %1062 = vmatprep.subr.mxu0 0.0
  %1063 = vmatpush2.msra.mxu0 0.0
  %1064 = vmatprep.subr.mxu0 0.0
  %1065 = vmatpush2.msra.mxu0 0.0
  %1066 = vmatprep.subr.mxu0 0.0
  %1067 = vmatpush2.msra.mxu0 0.0
  %1068 = vmatprep.subr.mxu0 0.0
  %1069 = vmatpush2.msra.mxu0 0.0
  %1070 = vmatprep.subr.mxu0 0.0
  %1071 = vmatpush2.msra.mxu0 0.0
  %1072 = vmatprep.subr.mxu0 0.0
  %1073 = vmatpush2.msra.mxu0 0.0
  %1074 = vmatprep.subr.mxu0 0.0
  %1075 = vmatpush2.msra.mxu0 0.0
  %1076 = vmatprep.subr.mxu0 0.0
  %1077 = vmatpush2.msra.mxu0 0.0
  %1078 = vmatprep.subr.mxu0 0.0
  %1079 = vmatpush2.msra.mxu0 0.0
  %1080 = vmatprep.subr.mxu0 0.0
  %1081 = vmatpush2.msra.mxu0 0.0
  %1082 = vmatprep.subr.mxu0 0.0
  %1083 = vmatpush2.msra.mxu0 0.0
  %1084 = vmatprep.mubr.f32.mxu0 0.0
  %1085 = vmatmul.mubr.f32.gmra.mxu0 %v1018
  %v1086 = vpop.f32.mrf.mxu0
  %v1087 = vadd.f32 0.0, %v1086
  %v1088 = vpop.f32.mrf.mxu0
  %1089 = vdwg.mxu0
  %v1090 = vadd.f32 %v306, %v1087
  %v1091 = vtanh.pop %v1090
  %1092 = vst.msk [vmem:[#allocation2 + $0x8] sm:$0xff] %vm340, %v1091
  %v1094 = vsel %vm340, %v1091, 0
  %1096 = vmatprep.subr.mxu0 0.0
  %1097 = vmatpush1.msra.mxu0 0.0
  %1098 = vmatprep.subr.mxu0 0.0
  %1099 = vmatpush1.msra.mxu0 0.0
  %1100 = vmatprep.subr.mxu0 0.0
  %1101 = vmatpush1.msra.mxu0 0.0
  %1102 = vmatprep.subr.mxu0 0.0
  %1103 = vmatpush1.msra.mxu0 0.0
  %1104 = vmatprep.subr.mxu0 0.0
  %1105 = vmatpush1.msra.mxu0 0.0
  %1106 = vmatprep.subr.mxu0 0.0
  %1107 = vmatpush1.msra.mxu0 0.0
  %1108 = vmatprep.subr.mxu0 0.0
  %1109 = vmatpush1.msra.mxu0 0.0
  %1110 = vmatprep.subr.mxu0 0.0
  %1111 = vmatpush1.msra.mxu0 0.0
  %1112 = vmatprep.subr.mxu0 0.0
  %1113 = vmatpush1.msra.mxu0 0.0
  %1114 = vmatprep.subr.mxu0 0.0
  %1115 = vmatpush1.msra.mxu0 0.0
  %1116 = vmatprep.subr.mxu0 0.0
  %1117 = vmatpush1.msra.mxu0 0.0
  %1118 = vmatprep.subr.mxu0 0.0
  %1119 = vmatpush1.msra.mxu0 0.0
  %1120 = vmatprep.subr.mxu0 0.0
  %1121 = vmatpush1.msra.mxu0 %v45
  %1122 = vmatprep.subr.mxu0 0.0
  %1123 = vmatpush1.msra.mxu0 %v44
  %1124 = vmatprep.subr.mxu0 0.0
  %1125 = vmatpush1.msra.mxu0 %v43
  %1126 = vmatprep.subr.mxu0 0.0
  %1127 = vmatpush1.msra.mxu0 %v42
  %1128 = vmatprep.subr.mxu0 0.0
  %1129 = vmatpush2.msra.mxu0 0.0
  %1130 = vmatprep.subr.mxu0 0.0
  %1131 = vmatpush2.msra.mxu0 0.0
  %1132 = vmatprep.subr.mxu0 0.0
  %1133 = vmatpush2.msra.mxu0 0.0
  %1134 = vmatprep.subr.mxu0 0.0
  %1135 = vmatpush2.msra.mxu0 0.0
  %1136 = vmatprep.subr.mxu0 0.0
  %1137 = vmatpush2.msra.mxu0 0.0
  %1138 = vmatprep.subr.mxu0 0.0
  %1139 = vmatpush2.msra.mxu0 0.0
  %1140 = vmatprep.subr.mxu0 0.0
  %1141 = vmatpush2.msra.mxu0 0.0
  %1142 = vmatprep.subr.mxu0 0.0
  %1143 = vmatpush2.msra.mxu0 0.0
  %1144 = vmatprep.subr.mxu0 0.0
  %1145 = vmatpush2.msra.mxu0 0.0
  %1146 = vmatprep.subr.mxu0 0.0
  %1147 = vmatpush2.msra.mxu0 0.0
  %1148 = vmatprep.subr.mxu0 0.0
  %1149 = vmatpush2.msra.mxu0 0.0
  %1150 = vmatprep.subr.mxu0 0.0
  %1151 = vmatpush2.msra.mxu0 0.0
  %1152 = vmatprep.subr.mxu0 0.0
  %1153 = vmatpush2.msra.mxu0 0.0
  %1154 = vmatprep.subr.mxu0 0.0
  %1155 = vmatpush2.msra.mxu0 0.0
  %1156 = vmatprep.subr.mxu0 0.0
  %1157 = vmatpush2.msra.mxu0 0.0
  %1158 = vmatprep.subr.mxu0 0.0
  %1159 = vmatpush2.msra.mxu0 0.0
  %1160 = vmatprep.mubr.f32.mxu0 0.0
  %1161 = vmatmul.mubr.f32.gmra.mxu0 %v1094
  %v1162 = vpop.f32.mrf.mxu0
  %v1163 = vadd.f32 0.0, %v1162
  %v1164 = vpop.f32.mrf.mxu0
  %1165 = vdwg.mxu0
  %v1166 = vadd.f32 %v311, %v1163
  %v1167 = vtanh.pop %v1166
  %1168 = vst.msk [vmem:[#allocation2 + $0x10] sm:$0xff] %vm340, %v1167
  %v1170 = vsel %vm340, %v1167, 0
  %1172 = vmatprep.subr.mxu0 0.0
  %1173 = vmatpush1.msra.mxu0 0.0
  %1174 = vmatprep.subr.mxu0 0.0
  %1175 = vmatpush1.msra.mxu0 0.0
  %1176 = vmatprep.subr.mxu0 0.0
  %1177 = vmatpush1.msra.mxu0 0.0
  %1178 = vmatprep.subr.mxu0 0.0
  %1179 = vmatpush1.msra.mxu0 0.0
  %1180 = vmatprep.subr.mxu0 0.0
  %1181 = vmatpush1.msra.mxu0 0.0
  %1182 = vmatprep.subr.mxu0 0.0
  %1183 = vmatpush1.msra.mxu0 0.0
  %1184 = vmatprep.subr.mxu0 0.0
  %1185 = vmatpush1.msra.mxu0 0.0
  %1186 = vmatprep.subr.mxu0 0.0
  %1187 = vmatpush1.msra.mxu0 0.0
  %1188 = vmatprep.subr.mxu0 0.0
  %1189 = vmatpush1.msra.mxu0 0.0
  %1190 = vmatprep.subr.mxu0 0.0
  %1191 = vmatpush1.msra.mxu0 0.0
  %1192 = vmatprep.subr.mxu0 0.0
  %1193 = vmatpush1.msra.mxu0 0.0
  %1194 = vmatprep.subr.mxu0 0.0
  %1195 = vmatpush1.msra.mxu0 0.0
  %1196 = vmatprep.subr.mxu0 0.0
  %1197 = vmatpush1.msra.mxu0 %v45
  %1198 = vmatprep.subr.mxu0 0.0
  %1199 = vmatpush1.msra.mxu0 %v44
  %1200 = vmatprep.subr.mxu0 0.0
  %1201 = vmatpush1.msra.mxu0 %v43
  %1202 = vmatprep.subr.mxu0 0.0
  %1203 = vmatpush1.msra.mxu0 %v42
  %1204 = vmatprep.subr.mxu0 0.0
  %1205 = vmatpush2.msra.mxu0 0.0
  %1206 = vmatprep.subr.mxu0 0.0
  %1207 = vmatpush2.msra.mxu0 0.0
  %1208 = vmatprep.subr.mxu0 0.0
  %1209 = vmatpush2.msra.mxu0 0.0
  %1210 = vmatprep.subr.mxu0 0.0
  %1211 = vmatpush2.msra.mxu0 0.0
  %1212 = vmatprep.subr.mxu0 0.0
  %1213 = vmatpush2.msra.mxu0 0.0
  %1214 = vmatprep.subr.mxu0 0.0
  %1215 = vmatpush2.msra.mxu0 0.0
  %1216 = vmatprep.subr.mxu0 0.0
  %1217 = vmatpush2.msra.mxu0 0.0
  %1218 = vmatprep.subr.mxu0 0.0
  %1219 = vmatpush2.msra.mxu0 0.0
  %1220 = vmatprep.subr.mxu0 0.0
  %1221 = vmatpush2.msra.mxu0 0.0
  %1222 = vmatprep.subr.mxu0 0.0
  %1223 = vmatpush2.msra.mxu0 0.0
  %1224 = vmatprep.subr.mxu0 0.0
  %1225 = vmatpush2.msra.mxu0 0.0
  %1226 = vmatprep.subr.mxu0 0.0
  %1227 = vmatpush2.msra.mxu0 0.0
  %1228 = vmatprep.subr.mxu0 0.0
  %1229 = vmatpush2.msra.mxu0 0.0
  %1230 = vmatprep.subr.mxu0 0.0
  %1231 = vmatpush2.msra.mxu0 0.0
  %1232 = vmatprep.subr.mxu0 0.0
  %1233 = vmatpush2.msra.mxu0 0.0
  %1234 = vmatprep.subr.mxu0 0.0
  %1235 = vmatpush2.msra.mxu0 0.0
  %1236 = vmatprep.mubr.f32.mxu0 0.0
  %1237 = vmatmul.mubr.f32.gmra.mxu0 %v1170
  %v1238 = vpop.f32.mrf.mxu0
  %v1239 = vadd.f32 0.0, %v1238
  %v1240 = vpop.f32.mrf.mxu0
  %1241 = vdwg.mxu0
  %v1242 = vadd.f32 %v316, %v1239
  %v1243 = vtanh.pop %v1242
  %1244 = vst.msk [vmem:[#allocation2 + $0x18] sm:$0xff] %vm340, %v1243
  %v1246 = vsel %vm340, %v1243, 0
  %1248 = vmatprep.subr.mxu0 0.0
  %1249 = vmatpush1.msra.mxu0 0.0
  %1250 = vmatprep.subr.mxu0 0.0
  %1251 = vmatpush1.msra.mxu0 0.0
  %1252 = vmatprep.subr.mxu0 0.0
  %1253 = vmatpush1.msra.mxu0 0.0
  %1254 = vmatprep.subr.mxu0 0.0
  %1255 = vmatpush1.msra.mxu0 0.0
  %1256 = vmatprep.subr.mxu0 0.0
  %1257 = vmatpush1.msra.mxu0 0.0
  %1258 = vmatprep.subr.mxu0 0.0
  %1259 = vmatpush1.msra.mxu0 0.0
  %1260 = vmatprep.subr.mxu0 0.0
  %1261 = vmatpush1.msra.mxu0 0.0
  %1262 = vmatprep.subr.mxu0 0.0
  %1263 = vmatpush1.msra.mxu0 0.0
  %1264 = vmatprep.subr.mxu0 0.0
  %1265 = vmatpush1.msra.mxu0 0.0
  %1266 = vmatprep.subr.mxu0 0.0
  %1267 = vmatpush1.msra.mxu0 0.0
  %1268 = vmatprep.subr.mxu0 0.0
  %1269 = vmatpush1.msra.mxu0 0.0
  %1270 = vmatprep.subr.mxu0 0.0
  %1271 = vmatpush1.msra.mxu0 0.0
  %1272 = vmatprep.subr.mxu0 0.0
  %1273 = vmatpush1.msra.mxu0 %v45
  %1274 = vmatprep.subr.mxu0 0.0
  %1275 = vmatpush1.msra.mxu0 %v44
  %1276 = vmatprep.subr.mxu0 0.0
  %1277 = vmatpush1.msra.mxu0 %v43
  %1278 = vmatprep.subr.mxu0 0.0
  %1279 = vmatpush1.msra.mxu0 %v42
  %1280 = vmatprep.subr.mxu0 0.0
  %1281 = vmatpush2.msra.mxu0 0.0
  %1282 = vmatprep.subr.mxu0 0.0
  %1283 = vmatpush2.msra.mxu0 0.0
  %1284 = vmatprep.subr.mxu0 0.0
  %1285 = vmatpush2.msra.mxu0 0.0
  %1286 = vmatprep.subr.mxu0 0.0
  %1287 = vmatpush2.msra.mxu0 0.0
  %1288 = vmatprep.subr.mxu0 0.0
  %1289 = vmatpush2.msra.mxu0 0.0
  %1290 = vmatprep.subr.mxu0 0.0
  %1291 = vmatpush2.msra.mxu0 0.0
  %1292 = vmatprep.subr.mxu0 0.0
  %1293 = vmatpush2.msra.mxu0 0.0
  %1294 = vmatprep.subr.mxu0 0.0
  %1295 = vmatpush2.msra.mxu0 0.0
  %1296 = vmatprep.subr.mxu0 0.0
  %1297 = vmatpush2.msra.mxu0 0.0
  %1298 = vmatprep.subr.mxu0 0.0
  %1299 = vmatpush2.msra.mxu0 0.0
  %1300 = vmatprep.subr.mxu0 0.0
  %1301 = vmatpush2.msra.mxu0 0.0
  %1302 = vmatprep.subr.mxu0 0.0
  %1303 = vmatpush2.msra.mxu0 0.0
  %1304 = vmatprep.subr.mxu0 0.0
  %1305 = vmatpush2.msra.mxu0 0.0
  %1306 = vmatprep.subr.mxu0 0.0
  %1307 = vmatpush2.msra.mxu0 0.0
  %1308 = vmatprep.subr.mxu0 0.0
  %1309 = vmatpush2.msra.mxu0 0.0
  %1310 = vmatprep.subr.mxu0 0.0
  %1311 = vmatpush2.msra.mxu0 0.0
  %1312 = vmatprep.mubr.f32.mxu0 0.0
  %1313 = vmatmul.mubr.f32.gmra.mxu0 %v1246
  %v1314 = vpop.f32.mrf.mxu0
  %v1315 = vadd.f32 0.0, %v1314
  %v1316 = vpop.f32.mrf.mxu0
  %1317 = vdwg.mxu0
  %v1318 = vadd.f32 %v321, %v1315
  %v1319 = vtanh.pop %v1318
  %1320 = vst.msk [vmem:[#allocation2 + $0x20] sm:$0xff] %vm340, %v1319
  %v1322 = vsel %vm340, %v1319, 0
  %1324 = vmatprep.subr.mxu0 0.0
  %1325 = vmatpush1.msra.mxu0 0.0
  %1326 = vmatprep.subr.mxu0 0.0
  %1327 = vmatpush1.msra.mxu0 0.0
  %1328 = vmatprep.subr.mxu0 0.0
  %1329 = vmatpush1.msra.mxu0 0.0
  %1330 = vmatprep.subr.mxu0 0.0
  %1331 = vmatpush1.msra.mxu0 0.0
  %1332 = vmatprep.subr.mxu0 0.0
  %1333 = vmatpush1.msra.mxu0 0.0
  %1334 = vmatprep.subr.mxu0 0.0
  %1335 = vmatpush1.msra.mxu0 0.0
  %1336 = vmatprep.subr.mxu0 0.0
  %1337 = vmatpush1.msra.mxu0 0.0
  %1338 = vmatprep.subr.mxu0 0.0
  %1339 = vmatpush1.msra.mxu0 0.0
  %1340 = vmatprep.subr.mxu0 0.0
  %1341 = vmatpush1.msra.mxu0 0.0
  %1342 = vmatprep.subr.mxu0 0.0
  %1343 = vmatpush1.msra.mxu0 0.0
  %1344 = vmatprep.subr.mxu0 0.0
  %1345 = vmatpush1.msra.mxu0 0.0
  %1346 = vmatprep.subr.mxu0 0.0
  %1347 = vmatpush1.msra.mxu0 0.0
  %1348 = vmatprep.subr.mxu0 0.0
  %1349 = vmatpush1.msra.mxu0 %v45
  %1350 = vmatprep.subr.mxu0 0.0
  %1351 = vmatpush1.msra.mxu0 %v44
  %1352 = vmatprep.subr.mxu0 0.0
  %1353 = vmatpush1.msra.mxu0 %v43
  %1354 = vmatprep.subr.mxu0 0.0
  %1355 = vmatpush1.msra.mxu0 %v42
  %1356 = vmatprep.subr.mxu0 0.0
  %1357 = vmatpush2.msra.mxu0 0.0
  %1358 = vmatprep.subr.mxu0 0.0
  %1359 = vmatpush2.msra.mxu0 0.0
  %1360 = vmatprep.subr.mxu0 0.0
  %1361 = vmatpush2.msra.mxu0 0.0
  %1362 = vmatprep.subr.mxu0 0.0
  %1363 = vmatpush2.msra.mxu0 0.0
  %1364 = vmatprep.subr.mxu0 0.0
  %1365 = vmatpush2.msra.mxu0 0.0
  %1366 = vmatprep.subr.mxu0 0.0
  %1367 = vmatpush2.msra.mxu0 0.0
  %1368 = vmatprep.subr.mxu0 0.0
  %1369 = vmatpush2.msra.mxu0 0.0
  %1370 = vmatprep.subr.mxu0 0.0
  %1371 = vmatpush2.msra.mxu0 0.0
  %1372 = vmatprep.subr.mxu0 0.0
  %1373 = vmatpush2.msra.mxu0 0.0
  %1374 = vmatprep.subr.mxu0 0.0
  %1375 = vmatpush2.msra.mxu0 0.0
  %1376 = vmatprep.subr.mxu0 0.0
  %1377 = vmatpush2.msra.mxu0 0.0
  %1378 = vmatprep.subr.mxu0 0.0
  %1379 = vmatpush2.msra.mxu0 0.0
  %1380 = vmatprep.subr.mxu0 0.0
  %1381 = vmatpush2.msra.mxu0 0.0
  %1382 = vmatprep.subr.mxu0 0.0
  %1383 = vmatpush2.msra.mxu0 0.0
  %1384 = vmatprep.subr.mxu0 0.0
  %1385 = vmatpush2.msra.mxu0 0.0
  %1386 = vmatprep.subr.mxu0 0.0
  %1387 = vmatpush2.msra.mxu0 0.0
  %1388 = vmatprep.mubr.f32.mxu0 0.0
  %1389 = vmatmul.mubr.f32.gmra.mxu0 %v1322
  %v1390 = vpop.f32.mrf.mxu0
  %v1391 = vadd.f32 0.0, %v1390
  %v1392 = vpop.f32.mrf.mxu0
  %1393 = vdwg.mxu0
  %v1394 = vadd.f32 %v326, %v1391
  %v1395 = vtanh.pop %v1394
  %1396 = vst.msk [vmem:[#allocation2 + $0x28] sm:$0xff] %vm340, %v1395
  %v1398 = vsel %vm340, %v1395, 0
  %1400 = vmatprep.subr.mxu0 0.0
  %1401 = vmatpush1.msra.mxu0 0.0
  %1402 = vmatprep.subr.mxu0 0.0
  %1403 = vmatpush1.msra.mxu0 0.0
  %1404 = vmatprep.subr.mxu0 0.0
  %1405 = vmatpush1.msra.mxu0 0.0
  %1406 = vmatprep.subr.mxu0 0.0
  %1407 = vmatpush1.msra.mxu0 0.0
  %1408 = vmatprep.subr.mxu0 0.0
  %1409 = vmatpush1.msra.mxu0 0.0
  %1410 = vmatprep.subr.mxu0 0.0
  %1411 = vmatpush1.msra.mxu0 0.0
  %1412 = vmatprep.subr.mxu0 0.0
  %1413 = vmatpush1.msra.mxu0 0.0
  %1414 = vmatprep.subr.mxu0 0.0
  %1415 = vmatpush1.msra.mxu0 0.0
  %1416 = vmatprep.subr.mxu0 0.0
  %1417 = vmatpush1.msra.mxu0 0.0
  %1418 = vmatprep.subr.mxu0 0.0
  %1419 = vmatpush1.msra.mxu0 0.0
  %1420 = vmatprep.subr.mxu0 0.0
  %1421 = vmatpush1.msra.mxu0 0.0
  %1422 = vmatprep.subr.mxu0 0.0
  %1423 = vmatpush1.msra.mxu0 0.0
  %1424 = vmatprep.subr.mxu0 0.0
  %1425 = vmatpush1.msra.mxu0 %v45
  %1426 = vmatprep.subr.mxu0 0.0
  %1427 = vmatpush1.msra.mxu0 %v44
  %1428 = vmatprep.subr.mxu0 0.0
  %1429 = vmatpush1.msra.mxu0 %v43
  %1430 = vmatprep.subr.mxu0 0.0
  %1431 = vmatpush1.msra.mxu0 %v42
  %1432 = vmatprep.subr.mxu0 0.0
  %1433 = vmatpush2.msra.mxu0 0.0
  %1434 = vmatprep.subr.mxu0 0.0
  %1435 = vmatpush2.msra.mxu0 0.0
  %1436 = vmatprep.subr.mxu0 0.0
  %1437 = vmatpush2.msra.mxu0 0.0
  %1438 = vmatprep.subr.mxu0 0.0
  %1439 = vmatpush2.msra.mxu0 0.0
  %1440 = vmatprep.subr.mxu0 0.0
  %1441 = vmatpush2.msra.mxu0 0.0
  %1442 = vmatprep.subr.mxu0 0.0
  %1443 = vmatpush2.msra.mxu0 0.0
  %1444 = vmatprep.subr.mxu0 0.0
  %1445 = vmatpush2.msra.mxu0 0.0
  %1446 = vmatprep.subr.mxu0 0.0
  %1447 = vmatpush2.msra.mxu0 0.0
  %1448 = vmatprep.subr.mxu0 0.0
  %1449 = vmatpush2.msra.mxu0 0.0
  %1450 = vmatprep.subr.mxu0 0.0
  %1451 = vmatpush2.msra.mxu0 0.0
  %1452 = vmatprep.subr.mxu0 0.0
  %1453 = vmatpush2.msra.mxu0 0.0
  %1454 = vmatprep.subr.mxu0 0.0
  %1455 = vmatpush2.msra.mxu0 0.0
  %1456 = vmatprep.subr.mxu0 0.0
  %1457 = vmatpush2.msra.mxu0 0.0
  %1458 = vmatprep.subr.mxu0 0.0
  %1459 = vmatpush2.msra.mxu0 0.0
  %1460 = vmatprep.subr.mxu0 0.0
  %1461 = vmatpush2.msra.mxu0 0.0
  %1462 = vmatprep.subr.mxu0 0.0
  %1463 = vmatpush2.msra.mxu0 0.0
  %1464 = vmatprep.mubr.f32.mxu0 0.0
  %1465 = vmatmul.mubr.f32.gmra.mxu0 %v1398
  %v1466 = vpop.f32.mrf.mxu0
  %v1467 = vadd.f32 0.0, %v1466
  %v1468 = vpop.f32.mrf.mxu0
  %1469 = vdwg.mxu0
  %v1470 = vadd.f32 %v331, %v1467
  %v1471 = vtanh.pop %v1470
  %1472 = vst.msk [vmem:[#allocation2 + $0x30] sm:$0xff] %vm340, %v1471
  %v1474 = vsel %vm340, %v1471, 0
  %1476 = vmatprep.subr.mxu0 0.0
  %1477 = vmatpush1.msra.mxu0 0.0
  %1478 = vmatprep.subr.mxu0 0.0
  %1479 = vmatpush1.msra.mxu0 0.0
  %1480 = vmatprep.subr.mxu0 0.0
  %1481 = vmatpush1.msra.mxu0 0.0
  %1482 = vmatprep.subr.mxu0 0.0
  %1483 = vmatpush1.msra.mxu0 0.0
  %1484 = vmatprep.subr.mxu0 0.0
  %1485 = vmatpush1.msra.mxu0 0.0
  %1486 = vmatprep.subr.mxu0 0.0
  %1487 = vmatpush1.msra.mxu0 0.0
  %1488 = vmatprep.subr.mxu0 0.0
  %1489 = vmatpush1.msra.mxu0 0.0
  %1490 = vmatprep.subr.mxu0 0.0
  %1491 = vmatpush1.msra.mxu0 0.0
  %1492 = vmatprep.subr.mxu0 0.0
  %1493 = vmatpush1.msra.mxu0 0.0
  %1494 = vmatprep.subr.mxu0 0.0
  %1495 = vmatpush1.msra.mxu0 0.0
  %1496 = vmatprep.subr.mxu0 0.0
  %1497 = vmatpush1.msra.mxu0 0.0
  %1498 = vmatprep.subr.mxu0 0.0
  %1499 = vmatpush1.msra.mxu0 0.0
  %1500 = vmatprep.subr.mxu0 0.0
  %1501 = vmatpush1.msra.mxu0 %v45
  %1502 = vmatprep.subr.mxu0 0.0
  %1503 = vmatpush1.msra.mxu0 %v44
  %1504 = vmatprep.subr.mxu0 0.0
  %1505 = vmatpush1.msra.mxu0 %v43
  %1506 = vmatprep.subr.mxu0 0.0
  %1507 = vmatpush1.msra.mxu0 %v42
  %1508 = vmatprep.subr.mxu0 0.0
  %1509 = vmatpush2.msra.mxu0 0.0
  %1510 = vmatprep.subr.mxu0 0.0
  %1511 = vmatpush2.msra.mxu0 0.0
  %1512 = vmatprep.subr.mxu0 0.0
  %1513 = vmatpush2.msra.mxu0 0.0
  %1514 = vmatprep.subr.mxu0 0.0
  %1515 = vmatpush2.msra.mxu0 0.0
  %1516 = vmatprep.subr.mxu0 0.0
  %1517 = vmatpush2.msra.mxu0 0.0
  %1518 = vmatprep.subr.mxu0 0.0
  %1519 = vmatpush2.msra.mxu0 0.0
  %1520 = vmatprep.subr.mxu0 0.0
  %1521 = vmatpush2.msra.mxu0 0.0
  %1522 = vmatprep.subr.mxu0 0.0
  %1523 = vmatpush2.msra.mxu0 0.0
  %1524 = vmatprep.subr.mxu0 0.0
  %1525 = vmatpush2.msra.mxu0 0.0
  %1526 = vmatprep.subr.mxu0 0.0
  %1527 = vmatpush2.msra.mxu0 0.0
  %1528 = vmatprep.subr.mxu0 0.0
  %1529 = vmatpush2.msra.mxu0 0.0
  %1530 = vmatprep.subr.mxu0 0.0
  %1531 = vmatpush2.msra.mxu0 0.0
  %1532 = vmatprep.subr.mxu0 0.0
  %1533 = vmatpush2.msra.mxu0 0.0
  %1534 = vmatprep.subr.mxu0 0.0
  %1535 = vmatpush2.msra.mxu0 0.0
  %1536 = vmatprep.subr.mxu0 0.0
  %1537 = vmatpush2.msra.mxu0 0.0
  %1538 = vmatprep.subr.mxu0 0.0
  %1539 = vmatpush2.msra.mxu0 0.0
  %1540 = vmatprep.mubr.f32.mxu0 0.0
  %1541 = vmatmul.mubr.f32.gmra.mxu0 %v1474
  %v1542 = vpop.f32.mrf.mxu0
  %v1543 = vadd.f32 0.0, %v1542
  %v1544 = vpop.f32.mrf.mxu0
  %1545 = vdwg.mxu0
  %v1546 = vadd.f32 %v336, %v1543
  %v1547 = vtanh.pop %v1546
  %1548 = vst.msk [vmem:[#allocation2 + $0x38] sm:$0xff] %vm340, %v1547
  %v1549 = vld [vmem:[#allocation2] sm:$0xff]
  %v1550 = vld [vmem:[#allocation2 + $0x8] sm:$0xff]
  %v1551 = vld [vmem:[#allocation2 + $0x10] sm:$0xff]
  %v1552 = vld [vmem:[#allocation2 + $0x18] sm:$0xff]
  %v1553 = vld [vmem:[#allocation2 + $0x20] sm:$0xff]
  %v1554 = vld [vmem:[#allocation2 + $0x28] sm:$0xff]
  %v1555 = vld [vmem:[#allocation2 + $0x30] sm:$0xff]
  %v1556 = vld [vmem:[#allocation2 + $0x38] sm:$0xff]
  %v1557 = vld [vmem:[%s9] sm:$0xff]
  %v1558 = vld [vmem:[%s9 + $0x8] sm:$0xff]
  %v1559 = vld [vmem:[%s9 + $0x10] sm:$0xff]
  %v1560 = vld [vmem:[%s9 + $0x18] sm:$0xff]
  %v1561 = vld [vmem:[%s10] sm:$0x1]
  %v1563 = vlaneseq
  %v1564 = vshrl.u32 %v1563, 7
  %v1565 = vsub.s32 0, %v1564
  %v1566 = vrot.slane %v1561, %v1565
  %v1569 = vsel %vm340, %v1549, 0
  %v1572 = vsel %vm340, %v1550, 0
  %v1575 = vsel %vm340, %v1551, 0
  %v1578 = vsel %vm340, %v1552, 0
  %v1581 = vsel %vm340, %v1553, 0
  %v1584 = vsel %vm340, %v1554, 0
  %v1587 = vsel %vm340, %v1555, 0
  %v1590 = vsel %vm340, %v1556, 0
  %1592 = vmatprep.subr.mxu0 0.0
  %1593 = vmatpush1.msra.mxu0 0.0
  %1594 = vmatprep.subr.mxu0 0.0
  %1595 = vmatpush1.msra.mxu0 0.0
  %1596 = vmatprep.subr.mxu0 0.0
  %1597 = vmatpush1.msra.mxu0 0.0
  %1598 = vmatprep.subr.mxu0 0.0
  %1599 = vmatpush1.msra.mxu0 0.0
  %1600 = vmatprep.subr.mxu0 0.0
  %1601 = vmatpush1.msra.mxu0 0.0
  %1602 = vmatprep.subr.mxu0 0.0
  %1603 = vmatpush1.msra.mxu0 0.0
  %1604 = vmatprep.subr.mxu0 0.0
  %1605 = vmatpush1.msra.mxu0 0.0
  %1606 = vmatprep.subr.mxu0 0.0
  %1607 = vmatpush1.msra.mxu0 0.0
  %1608 = vmatprep.subr.mxu0 0.0
  %1609 = vmatpush1.msra.mxu0 0.0
  %1610 = vmatprep.subr.mxu0 0.0
  %1611 = vmatpush1.msra.mxu0 0.0
  %1612 = vmatprep.subr.mxu0 0.0
  %1613 = vmatpush1.msra.mxu0 0.0
  %1614 = vmatprep.subr.mxu0 0.0
  %1615 = vmatpush1.msra.mxu0 0.0
  %1616 = vmatprep.subr.mxu0 0.0
  %1617 = vmatpush1.msra.mxu0 %v1560
  %1618 = vmatprep.subr.mxu0 0.0
  %1619 = vmatpush1.msra.mxu0 %v1559
  %1620 = vmatprep.subr.mxu0 0.0
  %1621 = vmatpush1.msra.mxu0 %v1558
  %1622 = vmatprep.subr.mxu0 0.0
  %1623 = vmatpush1.msra.mxu0 %v1557
  %1624 = vmatprep.subr.mxu0 0.0
  %1625 = vmatpush2.msra.mxu0 0.0
  %1626 = vmatprep.subr.mxu0 0.0
  %1627 = vmatpush2.msra.mxu0 0.0
  %1628 = vmatprep.subr.mxu0 0.0
  %1629 = vmatpush2.msra.mxu0 0.0
  %1630 = vmatprep.subr.mxu0 0.0
  %1631 = vmatpush2.msra.mxu0 0.0
  %1632 = vmatprep.subr.mxu0 0.0
  %1633 = vmatpush2.msra.mxu0 0.0
  %1634 = vmatprep.subr.mxu0 0.0
  %1635 = vmatpush2.msra.mxu0 0.0
  %1636 = vmatprep.subr.mxu0 0.0
  %1637 = vmatpush2.msra.mxu0 0.0
  %1638 = vmatprep.subr.mxu0 0.0
  %1639 = vmatpush2.msra.mxu0 0.0
  %1640 = vmatprep.subr.mxu0 0.0
  %1641 = vmatpush2.msra.mxu0 0.0
  %1642 = vmatprep.subr.mxu0 0.0
  %1643 = vmatpush2.msra.mxu0 0.0
  %1644 = vmatprep.subr.mxu0 0.0
  %1645 = vmatpush2.msra.mxu0 0.0
  %1646 = vmatprep.subr.mxu0 0.0
  %1647 = vmatpush2.msra.mxu0 0.0
  %1648 = vmatprep.subr.mxu0 0.0
  %1649 = vmatpush2.msra.mxu0 0.0
  %1650 = vmatprep.subr.mxu0 0.0
  %1651 = vmatpush2.msra.mxu0 0.0
  %1652 = vmatprep.subr.mxu0 0.0
  %1653 = vmatpush2.msra.mxu0 0.0
  %1654 = vmatprep.subr.mxu0 0.0
  %1655 = vmatpush2.msra.mxu0 0.0
  %1656 = vmatprep.mubr.f32.mxu0 0.0
  %1657 = vmatmul.mubr.f32.gmra.mxu0 %v1569
  %v1658 = vpop.f32.mrf.mxu0
  %v1659 = vadd.f32 %v1566, %v1658
  %v1660 = vpop.f32.mrf.mxu0
  %1661 = vmatprep.mubr.f32.mxu0 0.0
  %1662 = vmatmul.mubr.f32.gmra.mxu0 %v1572
  %v1663 = vpop.f32.mrf.mxu0
  %v1664 = vadd.f32 %v1566, %v1663
  %v1665 = vpop.f32.mrf.mxu0
  %1666 = vmatprep.mubr.f32.mxu0 0.0
  %1667 = vmatmul.mubr.f32.gmra.mxu0 %v1575
  %v1668 = vpop.f32.mrf.mxu0
  %v1669 = vadd.f32 %v1566, %v1668
  %v1670 = vpop.f32.mrf.mxu0
  %1671 = vmatprep.mubr.f32.mxu0 0.0
  %1672 = vmatmul.mubr.f32.gmra.mxu0 %v1578
  %v1673 = vpop.f32.mrf.mxu0
  %v1674 = vadd.f32 %v1566, %v1673
  %v1675 = vpop.f32.mrf.mxu0
  %1676 = vmatprep.mubr.f32.mxu0 0.0
  %1677 = vmatmul.mubr.f32.gmra.mxu0 %v1581
  %v1678 = vpop.f32.mrf.mxu0
  %v1679 = vadd.f32 %v1566, %v1678
  %v1680 = vpop.f32.mrf.mxu0
  %1681 = vmatprep.mubr.f32.mxu0 0.0
  %1682 = vmatmul.mubr.f32.gmra.mxu0 %v1584
  %v1683 = vpop.f32.mrf.mxu0
  %v1684 = vadd.f32 %v1566, %v1683
  %v1685 = vpop.f32.mrf.mxu0
  %1686 = vmatprep.mubr.f32.mxu0 0.0
  %1687 = vmatmul.mubr.f32.gmra.mxu0 %v1587
  %v1688 = vpop.f32.mrf.mxu0
  %v1689 = vadd.f32 %v1566, %v1688
  %v1690 = vpop.f32.mrf.mxu0
  %1691 = vmatprep.mubr.f32.mxu0 0.0
  %1692 = vmatmul.mubr.f32.gmra.mxu0 %v1590
  %v1693 = vpop.f32.mrf.mxu0
  %v1694 = vadd.f32 %v1566, %v1693
  %v1695 = vpop.f32.mrf.mxu0
  %1696 = vdwg.mxu0
  %1697 = vst.msk [vmem:[%s11] sm:$0xff] %vm63, %v1659
  %1698 = vst.msk [vmem:[%s11 + $0x8] sm:$0xff] %vm63, %v1664
  %1699 = vst.msk [vmem:[%s11 + $0x10] sm:$0xff] %vm63, %v1669
  %1700 = vst.msk [vmem:[%s11 + $0x18] sm:$0xff] %vm63, %v1674
  %1701 = vst.msk [vmem:[%s11 + $0x20] sm:$0xff] %vm63, %v1679
  %1702 = vst.msk [vmem:[%s11 + $0x28] sm:$0xff] %vm63, %v1684
  %1703 = vst.msk [vmem:[%s11 + $0x30] sm:$0xff] %vm63, %v1689
  %1704 = vst.msk [vmem:[%s11 + $0x38] sm:$0xff] %vm63, %v1694
  // Predicated region
  $region46: #{tpu_custom_call.1} parent=0 // pred_check
    _
  $region47: #{tpu_custom_call.1} parent=0 // pred_check_branch
    %1706 = sbr.rel (0) target = $region49
  $region48: #{tpu_custom_call.1} parent=0 // pred_region
    _
  $region49: #{tpu_custom_call.1} parent=0 // pred_fallthru
    _
  // Predicated region
  $region50: #{tpu_custom_call.1} parent=0 // pred_check
    _
  $region51: #{tpu_custom_call.1} parent=0 // pred_check_branch
    %1708 = sbr.rel (0) target = $region53
  $region52: #{tpu_custom_call.1} parent=0 // pred_region
    _
  $region53: #{tpu_custom_call.1} parent=0 // pred_fallthru
    _

</llo_original>
